<compile_context>
chip_gen: v7x
topology: tpu7x:2x2x1
jax: 0.10.0
libtpu: 0.0.40
codegen_flags: <defaults>
</compile_context>

<pallas_src>
import numpy as np
import jax
import jax.numpy as jnp
from jax import lax
from jax.experimental import pallas as pl
from jax.experimental.pallas import tpu as pltpu

EPS = 1e-5
NEG_SLOPE = 0.2
LANE = 128
_ACC_VREGS = 32          # target f32 accumulator footprint per row tile (in vregs)


def _round_up(x, m):
    return (x + m - 1) // m * m


def _vmem_limit_bytes():
    """Scoped-VMEM request sized off physical VMEM (v7x: 64 MiB, v5e/v6e: 128 MiB)."""
    try:
        info = pltpu.get_tpu_info()
        cap = int(getattr(info, "vmem_capacity_bytes", 64 * 1024 * 1024))
    except Exception:
        cap = 64 * 1024 * 1024           # conservative default = v7x per-TC physical VMEM
    return int(min(96 * 1024 * 1024, (cap * 3) // 4))


# ------------------------------ Pallas kernels ------------------------------ #

def _make_conv_stats_kernel(group_shifts, nb, tr, cp):
    """Pass 1: conv as qh*qw grouped MXU matmuls + packed per-(image,row-tile) BN sums."""

    def kernel(mask_ref, xph_ref, w_ref, y_ref, stats_ref):
        # mask_ref:  [1, 16, TR]       row 0 = validity mask (sum), row 9 = mask (ssq)
        # xph_ref:   [NB, XROWS, CF]   phase-folded image(s), CF = s*s*C_in
        # w_ref:     [G, CF, CP]       per-(qi,qj)-group weights, C_out zero-padded to CP
        # y_ref:     [NB, TR, CP]      lane-dense conv output tile
        # stats_ref: [NB, 1, 8, CP]    row 0 = sum, row 1 = sum of squares
        row0 = pl.multiple_of(pl.program_id(1) * tr, tr)
        msum = mask_ref[0, 0:8, :]                               # [8, TR]
        mssq = mask_ref[0, 8:16, :]                              # [8, TR]
        for ib in range(nb):                                     # statically unrolled
            acc = jnp.zeros((tr, cp), jnp.float32)
            for g, shift in enumerate(group_shifts):             # qh*qw groups (4 here)
                xt = xph_ref[ib, pl.ds(row0 + shift, tr), :]     # [TR, CF]
                acc = acc + jnp.dot(xt, w_ref[g],
                                    preferred_element_type=jnp.float32)
            y_ref[ib] = acc.astype(y_ref.dtype)                  # unmasked vst (CP=128k)
            # BN partial sums as small MXU matmuls (mask rows as LHS): no iota div/mod
            # on the VPU and no cross-sublane XLU reduction; single packed (8,CP) store.
            stats_ref[ib, 0] = (
                jnp.dot(msum, acc, preferred_element_type=jnp.float32)
                + jnp.dot(mssq, acc * acc, preferred_element_type=jnp.float32))

    return kernel


def _bn_lrelu_kernel(y_ref, scale_ref, shift_ref, o_ref):
    """Pass 2: folded BatchNorm affine (y*scale + shift) then LeakyReLU(0.2), in f32."""
    z = y_ref[...].astype(jnp.float32) * scale_ref[...] + shift_ref[...]
    o_ref[...] = jnp.where(z > 0, z, NEG_SLOPE * z).astype(o_ref.dtype)


# ------------------------------ wrapper helpers ------------------------------ #

def _phase_fold(x, stride, hh, ww, xrows):
    """x: [N,H,W,C] -> [N, XROWS, s*s*C].

    Phases are folded into the channel (lane) dim so every (qi,qj) tap group becomes a
    contiguous row-shifted view of the same tensor -- no strided loads, no im2col, and a
    s*s-times deeper matmul contraction than per-phase layouts.
    """
    n, h, w, c = x.shape
    need_h, need_w = stride * hh, stride * ww
    x = x[:, :min(h, need_h), :min(w, need_w), :]
    pad_h, pad_w = need_h - x.shape[1], need_w - x.shape[2]
    if pad_h or pad_w:
        x = jnp.pad(x, ((0, 0), (0, pad_h), (0, pad_w), (0, 0)))
    x = x.reshape(n, hh, stride, ww, stride, c)
    x = x.transpose(0, 1, 3, 2, 4, 5)                    # [N, HH, WW, s, s, C]
    x = x.reshape(n, hh * ww, stride * stride * c)
    return jnp.pad(x, ((0, 0), (0, xrows - hh * ww), (0, 0)))


def _group_weights(w, stride, qh, qw, cp):
    """[C_out, C_in, KH, KW] -> [qh*qw, s*s*C_in, CP].

    Group g=(qi,qj) carries the taps (qi*s+ri, qj*s+rj), laid out to match the
    phase-folded channel order (ri, rj, c). C_out is zero-padded to CP for lane density.
    """
    co, ci, kh, kw = w.shape
    kh_p, kw_p = qh * stride, qw * stride
    if (kh_p, kw_p) != (kh, kw):                         # kernel not a multiple of stride
        w = jnp.pad(w, ((0, 0), (0, 0), (0, kh_p - kh), (0, kw_p - kw)))
    w = w.reshape(co, ci, qh, stride, qw, stride)
    w = jnp.transpose(w, (2, 4, 3, 5, 1, 0))             # (qi, qj, ri, rj, ci, co)
    w = w.reshape(qh * qw, stride * stride * ci, co)
    return jnp.pad(w, ((0, 0), (0, 0), (0, cp - co)))


def _conv_bn_lrelu_nhwc(x, params, stride, kh, kw, padding, use_bf16_mxu):
    n, h, w, c_in = x.shape
    if padding:
        x = jnp.pad(x, ((0, 0), (padding, padding), (padding, padding), (0, 0)))
        h, w = x.shape[1], x.shape[2]
    oh = (h - kh) // stride + 1
    ow = (w - kw) // stride + 1
    c_out = params["w"].shape[0]
    cp = _round_up(c_out, LANE)                          # lane-dense channel padding
    qh = -(-kh // stride)
    qw = -(-kw // stride)
    hh = oh + qh - 1
    ww = ow + qw - 1
    cf = stride * stride * c_in                          # folded contraction depth

    # Row tiling: TR chosen so the f32 accumulator stays <= ~32 vregs (no spills).
    m_real = hh * ww
    tr_cap = max(8, min(256, ((_ACC_VREGS * 8 * LANE) // cp) // 8 * 8))
    tr = min(tr_cap, _round_up(m_real, 8))
    rt = -(-m_real // tr)
    rows_padded = rt * tr

    # Collapse NB images into one grid step when row tiles are small (amortize per-step
    # pipeline overhead); NB must divide N.
    nb = 1
    for d in range(min(n, max(1, 1024 // tr)), 0, -1):
        if n % d == 0:
            nb = d
            break

    max_shift = (qh - 1) * ww + (qw - 1)
    xrows = _round_up(rows_padded + max_shift, 8)
    xph = _phase_fold(x, stride, hh, ww, xrows)
    # Conv bias intentionally dropped: training-mode BatchNorm subtracts it back out.
    w_groups = _group_weights(params["w"], stride, qh, qw, cp)

    if use_bf16_mxu:
        # v6e/v7x MXU peak path; accumulation and statistics stay f32 inside the kernel.
        xph = xph.astype(jnp.bfloat16)
        w_groups = w_groups.astype(jnp.bfloat16)
    y_dtype = jnp.bfloat16 if use_bf16_mxu else jnp.float32

    # Precomputed per-row-tile validity mask (host side, so no div/mod in the kernel).
    # Row 0 routes the valid-row sum into stats row 0; row 9 routes ssq into stats row 1.
    m_idx = np.arange(rows_padded)
    valid = (((m_idx // ww) < oh) & ((m_idx % ww) < ow)).astype(np.float32)
    mask_np = np.zeros((rt, 16, tr), np.float32)
    mask_np[:, 0, :] = valid.reshape(rt, tr)
    mask_np[:, 9, :] = valid.reshape(rt, tr)
    mask = jnp.asarray(mask_np)

    group_shifts = [qi * ww + qj for qi in range(qh) for qj in range(qw)]
    kernel = _make_conv_stats_kernel(group_shifts, nb, tr, cp)

    vmem_limit = _vmem_limit_bytes()
    cparams1 = pltpu.CompilerParams(
        dimension_semantics=("parallel", "parallel"),    # images x row-tiles for megacore
        vmem_limit_bytes=vmem_limit,
    )

    # Pass 1: conv + per-(image, row-tile) BN partial sums.  The xph block index is
    # constant along the row-tile axis, so it stays resident in VMEM per image.
    # TODO(synk): for very large feature maps, DMA only the [TR+max_shift] row window per
    # step (manual make_async_copy double-buffer) instead of keeping the image resident.
    y_pad, stats = pl.pallas_call(
        kernel,
        grid=(n // nb, rt),
        in_specs=[
            pl.BlockSpec((1, 16, tr), lambda b, r: (r, 0, 0)),
            pl.BlockSpec((nb, xrows, cf), lambda b, r: (b, 0, 0)),
            pl.BlockSpec((qh * qw, cf, cp), lambda b, r: (0, 0, 0)),
        ],
        out_specs=[
            pl.BlockSpec((nb, tr, cp), lambda b, r: (b, r, 0)),
            pl.BlockSpec((nb, 1, 8, cp), lambda b, r: (b, r, 0, 0)),
        ],
        out_shape=[
            jax.ShapeDtypeStruct((n, rows_padded, cp), y_dtype),
            jax.ShapeDtypeStruct((n, rt, 8, cp), jnp.float32),
        ],
        compiler_params=cparams1,
    )(mask, xph, w_groups)

    # Global (cross-tile) BatchNorm statistics -> folded scale / shift.  Tiny jnp reduce.
    cnt = jnp.float32(n * oh * ow)
    s1 = jnp.sum(stats[:, :, 0, :], axis=(0, 1))
    s2 = jnp.sum(stats[:, :, 1, :], axis=(0, 1))
    mean = s1 / cnt
    var = jnp.maximum(s2 / cnt - mean * mean, 0.0)
    gamma = jnp.pad(params["gamma"], (0, cp - c_out))
    beta = jnp.pad(params["beta"], (0, cp - c_out))
    scale = gamma * lax.rsqrt(var + EPS)
    shift = beta - mean * scale

    # Pass 2: folded BN affine + LeakyReLU on the flattened activation with large
    # lane-dense row tiles (this pass is pure HBM bandwidth).
    # TODO(synk): when chaining non-final blocks, fuse this affine+LeakyReLU into the next
    # block's pass-1 load path to avoid one full HBM round trip of the activation tensor.
    total_rows = n * rows_padded
    t2 = tr
    while t2 < 512 and total_rows % (t2 * 2) == 0:
        t2 *= 2
    cparams2 = pltpu.CompilerParams(
        dimension_semantics=("parallel",),
        vmem_limit_bytes=vmem_limit,
    )
    z_flat = pl.pallas_call(
        _bn_lrelu_kernel,
        grid=(total_rows // t2,),
        in_specs=[
            pl.BlockSpec((t2, cp), lambda i: (i, 0)),
            pl.BlockSpec((1, cp), lambda i: (0, 0)),
            pl.BlockSpec((1, cp), lambda i: (0, 0)),
        ],
        out_specs=pl.BlockSpec((t2, cp), lambda i: (i, 0)),
        out_shape=jax.ShapeDtypeStruct((total_rows, cp), jnp.float32),
        compiler_params=cparams2,
    )(y_pad.reshape(total_rows, cp), scale.reshape(1, cp), shift.reshape(1, cp))

    # Drop row / channel padding only at the boundary.
    z = z_flat.reshape(n, rows_padded, cp)[:, :hh * ww, :].reshape(n, hh, ww, cp)
    return z[:, :oh, :ow, :c_out]


# --------------------------- final block (plain XLA) ------------------------- #

def _pool_matrix(in_size, out_size):
    m = np.zeros((out_size, in_size), np.float32)
    for i in range(out_size):
        s = (i * in_size) // out_size
        e = -(-((i + 1) * in_size) // out_size)
        m[i, s:e] = 1.0 / (e - s)
    return jnp.asarray(m)


def _adaptive_avg_pool_nhwc(x, out_hw=(4, 4)):
    """Exact AdaptiveAvgPool2d via two small averaging matmuls (no slice loops)."""
    _, h, w, _ = x.shape
    return jnp.einsum("ih,nhwc,jw->nijc",
                      _pool_matrix(h, out_hw[0]), x, _pool_matrix(w, out_hw[1]))


def _final_block_nhwc(x, params, stride, padding):
    # After the 4x4 pool the conv is a ~[N, C_in*16] @ [C_in*16, C_out] matvec;
    # pallas_call launch/step overhead dominates, so keep it in XLA.
    xp = _adaptive_avg_pool_nhwc(x, (4, 4))
    w_hwio = jnp.transpose(params["w"], (2, 3, 1, 0))
    y = lax.conv_general_dilated(
        xp, w_hwio, (stride, stride), [(padding, padding), (padding, padding)],
        dimension_numbers=("NHWC", "HWIO", "NHWC"),
        precision=lax.Precision.HIGHEST)
    return y + params["b"].reshape(1, 1, 1, -1)


# ------------------------------- public API ---------------------------------- #

def deepconv_discriminator_block_nhwc(x, params, stride=2, kernel_size=4,
                                      padding=0, final_block=False,
                                      use_bf16_mxu=False):
    """Forward pass of the PyTorch block; NHWC in / NHWC out (use this for chaining)."""
    if final_block:
        return _final_block_nhwc(x, params, stride, padding)
    return _conv_bn_lrelu_nhwc(x, params, stride, kernel_size, kernel_size,
                               padding, use_bf16_mxu)


def deepconv_discriminator_block(x_nchw, params, **kwargs):
    """PyTorch-convention (NCHW) API boundary.  Chained blocks should call the NHWC
    variant directly to avoid per-block layout round trips."""
    y = deepconv_discriminator_block_nhwc(
        jnp.transpose(x_nchw, (0, 2, 3, 1)), params, **kwargs)
    return jnp.transpose(y, (0, 3, 1, 2))


def init_params(key, c_in, c_out, kernel_size=4):
    """Deterministic init mimicking PyTorch Conv2d default (uniform +/- 1/sqrt(fan_in))."""
    k_w, k_b = jax.random.split(key)
    fan_in = c_in * kernel_size * kernel_size
    bound = 1.0 / (fan_in ** 0.5)
    w = jax.random.uniform(k_w, (c_out, c_in, kernel_size, kernel_size),
                           jnp.float32, -bound, bound)
    b = jax.random.uniform(k_b, (c_out,), jnp.float32, -bound, bound)
    gamma = jnp.ones((c_out,), jnp.float32)
    beta = jnp.zeros((c_out,), jnp.float32)
    return {"w": w, "b": b, "gamma": gamma, "beta": beta}


# ------------------------------ reference (XLA) ------------------------------- #

def _reference_block_nhwc(x, params, stride=2, kernel_size=4, padding=0,
                          final_block=False):
    """Pure-XLA reference of the PyTorch module for the correctness check."""
    del kernel_size
    if final_block:
        x = _adaptive_avg_pool_nhwc(x, (4, 4))
    w_hwio = jnp.transpose(params["w"], (2, 3, 1, 0))
    y = lax.conv_general_dilated(
        x, w_hwio, (stride, stride), [(padding, padding)] * 2,
        dimension_numbers=("NHWC", "HWIO", "NHWC"),
        precision=lax.Precision.HIGHEST)
    y = y + params["b"].reshape(1, 1, 1, -1)
    if final_block:
        return y
    mean = jnp.mean(y, axis=(0, 1, 2))
    var = jnp.mean((y - mean) ** 2, axis=(0, 1, 2))
    z = params["gamma"] * ((y - mean) * lax.rsqrt(var + EPS)) + params["beta"]
    return jnp.where(z > 0, z, NEG_SLOPE * z)


# ---------------------------------- main -------------------------------------- #

if __name__ == "__main__":
    key = jax.random.PRNGKey(0)
    k_x, k_p1, k_p2 = jax.random.split(key, 3)

    x_nchw = jax.random.normal(k_x, (2, 4, 16, 16), jnp.float32)     # PyTorch NCHW
    params1 = init_params(k_p1, c_in=4, c_out=8, kernel_size=4)      # non-final block
    params2 = init_params(k_p2, c_in=8, c_out=1, kernel_size=4)      # final block

    @jax.jit
    def forward(x_nchw, p1, p2):
        # NCHW only at the API boundary; blocks chain in NHWC.
        x = jnp.transpose(x_nchw, (0, 2, 3, 1))
        y1 = deepconv_discriminator_block_nhwc(x, p1, final_block=False)
        y2 = deepconv_discriminator_block_nhwc(y1, p2, final_block=True)
        return jnp.transpose(y1, (0, 3, 1, 2)), jnp.transpose(y2, (0, 3, 1, 2))

    y1, y2 = forward(x_nchw, params1, params2)
    jax.block_until_ready((y1, y2))
    assert y1.shape == (2, 8, 7, 7) and y2.shape == (2, 1, 1, 1)

    # Correctness check against the pure-XLA reference of the PyTorch module.
    x_nhwc = jnp.transpose(x_nchw, (0, 2, 3, 1))
    r1 = _reference_block_nhwc(x_nhwc, params1, final_block=False)
    r2 = _reference_block_nhwc(r1, params2, final_block=True)
    np.testing.assert_allclose(np.asarray(y1),
                               np.asarray(jnp.transpose(r1, (0, 3, 1, 2))),
                               rtol=2e-3, atol=2e-3)
    np.testing.assert_allclose(np.asarray(y2),
                               np.asarray(jnp.transpose(r2, (0, 3, 1, 2))),
                               rtol=2e-3, atol=2e-3)
    print("KERNEL_OK")
</pallas_src>

<mosaic_0001>
module attributes {stable_mosaic.version = 11 : i64} {
  func.func @kernel(%arg0: i32, %arg1: i32, %arg2: memref<1x16x64xf32, #tpu.memory_space<vmem>>, %arg3: memref<2x80x16xf32, #tpu.memory_space<vmem>>, %arg4: memref<4x16x128xf32, #tpu.memory_space<vmem>>, %arg5: memref<2x64x128xf32, #tpu.memory_space<vmem>>, %arg6: memref<2x1x8x128xf32, #tpu.memory_space<vmem>>) attributes {dimension_semantics = [#tpu.dimension_semantics<parallel>, #tpu.dimension_semantics<parallel>], iteration_bounds = array<i64: 1, 1>, scalar_prefetch = 0 : i64, scratch_operands = 0 : i64, tpu.core_type = #tpu.core_type<tc>, window_params = [{transform_indices = @transform_0, window_bounds = array<i64: 1, 16, 64>}, {transform_indices = @transform_1, window_bounds = array<i64: 2, 80, 16>}, {pipeline_mode = #tpu.pipeline_mode<synchronous>, transform_indices = @transform_2, window_bounds = array<i64: 4, 16, 128>}, {transform_indices = @transform_3, window_bounds = array<i64: 2, 64, 128>}, {transform_indices = @transform_4, window_bounds = array<i64: 2, 1, 8, 128>}]} {
    %c64_i32 = arith.constant 64 : i32
    %0 = arith.muli %arg1, %c64_i32 : i32
    %1 = tpu.assume_multiple %0, 64 : i32
    %c0 = arith.constant 0 : index
    %c0_0 = arith.constant 0 : index
    %c0_1 = arith.constant 0 : index
    %2 = vector.load %arg2[%c0, %c0_0, %c0_1] : memref<1x16x64xf32, #tpu.memory_space<vmem>>, vector<1x8x64xf32>
    %3 = vector.shape_cast %2 : vector<1x8x64xf32> to vector<8x64xf32>
    %c0_2 = arith.constant 0 : index
    %c8 = arith.constant 8 : index
    %c0_3 = arith.constant 0 : index
    %4 = vector.load %arg2[%c0_2, %c8, %c0_3] : memref<1x16x64xf32, #tpu.memory_space<vmem>>, vector<1x8x64xf32>
    %5 = vector.shape_cast %4 : vector<1x8x64xf32> to vector<8x64xf32>
    %cst = arith.constant 0.000000e+00 : f32
    %6 = vector.broadcast %cst : f32 to vector<64x128xf32>
    %c0_i32 = arith.constant 0 : i32
    %7 = arith.addi %1, %c0_i32 : i32
    %c0_4 = arith.constant 0 : index
    %8 = arith.index_cast %7 : i32 to index
    %c0_5 = arith.constant 0 : index
    %9 = vector.load %arg3[%c0_4, %8, %c0_5] : memref<2x80x16xf32, #tpu.memory_space<vmem>>, vector<1x64x16xf32>
    %10 = vector.shape_cast %9 : vector<1x64x16xf32> to vector<64x16xf32>
    %c0_6 = arith.constant 0 : index
    %c0_7 = arith.constant 0 : index
    %c0_8 = arith.constant 0 : index
    %11 = vector.load %arg4[%c0_6, %c0_7, %c0_8] : memref<4x16x128xf32, #tpu.memory_space<vmem>>, vector<1x16x128xf32>
    %12 = vector.shape_cast %11 : vector<1x16x128xf32> to vector<16x128xf32>
    %cst_9 = arith.constant dense<0.000000e+00> : vector<64x128xf32>
    %13 = tpu.matmul %10, %12, %cst_9 {dimension_numbers = #tpu.dot_dimension_numbers<[1], [0], [0], [1], [0, 0, 1, 1], [], []>} : vector<64x16xf32>, vector<16x128xf32>, vector<64x128xf32> -> vector<64x128xf32>
    %14 = arith.addf %6, %13 : vector<64x128xf32>
    %c1_i32 = arith.constant 1 : i32
    %15 = arith.addi %1, %c1_i32 : i32
    %c0_10 = arith.constant 0 : index
    %16 = arith.index_cast %15 : i32 to index
    %c0_11 = arith.constant 0 : index
    %17 = vector.load %arg3[%c0_10, %16, %c0_11] : memref<2x80x16xf32, #tpu.memory_space<vmem>>, vector<1x64x16xf32>
    %18 = vector.shape_cast %17 : vector<1x64x16xf32> to vector<64x16xf32>
    %c1 = arith.constant 1 : index
    %c0_12 = arith.constant 0 : index
    %c0_13 = arith.constant 0 : index
    %19 = vector.load %arg4[%c1, %c0_12, %c0_13] : memref<4x16x128xf32, #tpu.memory_space<vmem>>, vector<1x16x128xf32>
    %20 = vector.shape_cast %19 : vector<1x16x128xf32> to vector<16x128xf32>
    %cst_14 = arith.constant dense<0.000000e+00> : vector<64x128xf32>
    %21 = tpu.matmul %18, %20, %cst_14 {dimension_numbers = #tpu.dot_dimension_numbers<[1], [0], [0], [1], [0, 0, 1, 1], [], []>} : vector<64x16xf32>, vector<16x128xf32>, vector<64x128xf32> -> vector<64x128xf32>
    %22 = arith.addf %14, %21 : vector<64x128xf32>
    %c8_i32 = arith.constant 8 : i32
    %23 = arith.addi %1, %c8_i32 : i32
    %c0_15 = arith.constant 0 : index
    %24 = arith.index_cast %23 : i32 to index
    %c0_16 = arith.constant 0 : index
    %25 = vector.load %arg3[%c0_15, %24, %c0_16] : memref<2x80x16xf32, #tpu.memory_space<vmem>>, vector<1x64x16xf32>
    %26 = vector.shape_cast %25 : vector<1x64x16xf32> to vector<64x16xf32>
    %c2 = arith.constant 2 : index
    %c0_17 = arith.constant 0 : index
    %c0_18 = arith.constant 0 : index
    %27 = vector.load %arg4[%c2, %c0_17, %c0_18] : memref<4x16x128xf32, #tpu.memory_space<vmem>>, vector<1x16x128xf32>
    %28 = vector.shape_cast %27 : vector<1x16x128xf32> to vector<16x128xf32>
    %cst_19 = arith.constant dense<0.000000e+00> : vector<64x128xf32>
    %29 = tpu.matmul %26, %28, %cst_19 {dimension_numbers = #tpu.dot_dimension_numbers<[1], [0], [0], [1], [0, 0, 1, 1], [], []>} : vector<64x16xf32>, vector<16x128xf32>, vector<64x128xf32> -> vector<64x128xf32>
    %30 = arith.addf %22, %29 : vector<64x128xf32>
    %c9_i32 = arith.constant 9 : i32
    %31 = arith.addi %1, %c9_i32 : i32
    %c0_20 = arith.constant 0 : index
    %32 = arith.index_cast %31 : i32 to index
    %c0_21 = arith.constant 0 : index
    %33 = vector.load %arg3[%c0_20, %32, %c0_21] : memref<2x80x16xf32, #tpu.memory_space<vmem>>, vector<1x64x16xf32>
    %34 = vector.shape_cast %33 : vector<1x64x16xf32> to vector<64x16xf32>
    %c3 = arith.constant 3 : index
    %c0_22 = arith.constant 0 : index
    %c0_23 = arith.constant 0 : index
    %35 = vector.load %arg4[%c3, %c0_22, %c0_23] : memref<4x16x128xf32, #tpu.memory_space<vmem>>, vector<1x16x128xf32>
    %36 = vector.shape_cast %35 : vector<1x16x128xf32> to vector<16x128xf32>
    %cst_24 = arith.constant dense<0.000000e+00> : vector<64x128xf32>
    %37 = tpu.matmul %34, %36, %cst_24 {dimension_numbers = #tpu.dot_dimension_numbers<[1], [0], [0], [1], [0, 0, 1, 1], [], []>} : vector<64x16xf32>, vector<16x128xf32>, vector<64x128xf32> -> vector<64x128xf32>
    %38 = arith.addf %30, %37 : vector<64x128xf32>
    %c0_25 = arith.constant 0 : index
    %c0_26 = arith.constant 0 : index
    %c0_27 = arith.constant 0 : index
    %39 = vector.load %arg5[%c0_25, %c0_26, %c0_27] : memref<2x64x128xf32, #tpu.memory_space<vmem>>, vector<1x64x128xf32>
    %40 = vector.shape_cast %39 : vector<1x64x128xf32> to vector<64x128xf32>
    %41 = vector.shape_cast %38 : vector<64x128xf32> to vector<1x64x128xf32>
    tpu.vector_store %arg5[%c0_25, %c0_26, %c0_27], %41 {strides = array<i32>} : memref<2x64x128xf32, #tpu.memory_space<vmem>>, vector<1x64x128xf32>,
    %cst_28 = arith.constant dense<0.000000e+00> : vector<8x128xf32>
    %42 = tpu.matmul %3, %38, %cst_28 {dimension_numbers = #tpu.dot_dimension_numbers<[1], [0], [0], [1], [0, 0, 1, 1], [], []>} : vector<8x64xf32>, vector<64x128xf32>, vector<8x128xf32> -> vector<8x128xf32>
    %43 = arith.mulf %38, %38 : vector<64x128xf32>
    %cst_29 = arith.constant dense<0.000000e+00> : vector<8x128xf32>
    %44 = tpu.matmul %5, %43, %cst_29 {dimension_numbers = #tpu.dot_dimension_numbers<[1], [0], [0], [1], [0, 0, 1, 1], [], []>} : vector<8x64xf32>, vector<64x128xf32>, vector<8x128xf32> -> vector<8x128xf32>
    %45 = arith.addf %42, %44 : vector<8x128xf32>
    %c0_30 = arith.constant 0 : index
    %c0_31 = arith.constant 0 : index
    %c0_32 = arith.constant 0 : index
    %c0_33 = arith.constant 0 : index
    %46 = vector.load %arg6[%c0_30, %c0_31, %c0_32, %c0_33] : memref<2x1x8x128xf32, #tpu.memory_space<vmem>>, vector<1x1x8x128xf32>
    %47 = vector.shape_cast %46 : vector<1x1x8x128xf32> to vector<8x128xf32>
    %48 = vector.shape_cast %45 : vector<8x128xf32> to vector<1x1x8x128xf32>
    tpu.vector_store %arg6[%c0_30, %c0_31, %c0_32, %c0_33], %48 {strides = array<i32>} : memref<2x1x8x128xf32, #tpu.memory_space<vmem>>, vector<1x1x8x128xf32>,
    %cst_34 = arith.constant 0.000000e+00 : f32
    %49 = vector.broadcast %cst_34 : f32 to vector<64x128xf32>
    %c0_i32_35 = arith.constant 0 : i32
    %50 = arith.addi %1, %c0_i32_35 : i32
    %c1_36 = arith.constant 1 : index
    %51 = arith.index_cast %50 : i32 to index
    %c0_37 = arith.constant 0 : index
    %52 = vector.load %arg3[%c1_36, %51, %c0_37] : memref<2x80x16xf32, #tpu.memory_space<vmem>>, vector<1x64x16xf32>
    %53 = vector.shape_cast %52 : vector<1x64x16xf32> to vector<64x16xf32>
    %c0_38 = arith.constant 0 : index
    %c0_39 = arith.constant 0 : index
    %c0_40 = arith.constant 0 : index
    %54 = vector.load %arg4[%c0_38, %c0_39, %c0_40] : memref<4x16x128xf32, #tpu.memory_space<vmem>>, vector<1x16x128xf32>
    %55 = vector.shape_cast %54 : vector<1x16x128xf32> to vector<16x128xf32>
    %cst_41 = arith.constant dense<0.000000e+00> : vector<64x128xf32>
    %56 = tpu.matmul %53, %55, %cst_41 {dimension_numbers = #tpu.dot_dimension_numbers<[1], [0], [0], [1], [0, 0, 1, 1], [], []>} : vector<64x16xf32>, vector<16x128xf32>, vector<64x128xf32> -> vector<64x128xf32>
    %57 = arith.addf %49, %56 : vector<64x128xf32>
    %c1_i32_42 = arith.constant 1 : i32
    %58 = arith.addi %1, %c1_i32_42 : i32
    %c1_43 = arith.constant 1 : index
    %59 = arith.index_cast %58 : i32 to index
    %c0_44 = arith.constant 0 : index
    %60 = vector.load %arg3[%c1_43, %59, %c0_44] : memref<2x80x16xf32, #tpu.memory_space<vmem>>, vector<1x64x16xf32>
    %61 = vector.shape_cast %60 : vector<1x64x16xf32> to vector<64x16xf32>
    %c1_45 = arith.constant 1 : index
    %c0_46 = arith.constant 0 : index
    %c0_47 = arith.constant 0 : index
    %62 = vector.load %arg4[%c1_45, %c0_46, %c0_47] : memref<4x16x128xf32, #tpu.memory_space<vmem>>, vector<1x16x128xf32>
    %63 = vector.shape_cast %62 : vector<1x16x128xf32> to vector<16x128xf32>
    %cst_48 = arith.constant dense<0.000000e+00> : vector<64x128xf32>
    %64 = tpu.matmul %61, %63, %cst_48 {dimension_numbers = #tpu.dot_dimension_numbers<[1], [0], [0], [1], [0, 0, 1, 1], [], []>} : vector<64x16xf32>, vector<16x128xf32>, vector<64x128xf32> -> vector<64x128xf32>
    %65 = arith.addf %57, %64 : vector<64x128xf32>
    %c8_i32_49 = arith.constant 8 : i32
    %66 = arith.addi %1, %c8_i32_49 : i32
    %c1_50 = arith.constant 1 : index
    %67 = arith.index_cast %66 : i32 to index
    %c0_51 = arith.constant 0 : index
    %68 = vector.load %arg3[%c1_50, %67, %c0_51] : memref<2x80x16xf32, #tpu.memory_space<vmem>>, vector<1x64x16xf32>
    %69 = vector.shape_cast %68 : vector<1x64x16xf32> to vector<64x16xf32>
    %c2_52 = arith.constant 2 : index
    %c0_53 = arith.constant 0 : index
    %c0_54 = arith.constant 0 : index
    %70 = vector.load %arg4[%c2_52, %c0_53, %c0_54] : memref<4x16x128xf32, #tpu.memory_space<vmem>>, vector<1x16x128xf32>
    %71 = vector.shape_cast %70 : vector<1x16x128xf32> to vector<16x128xf32>
    %cst_55 = arith.constant dense<0.000000e+00> : vector<64x128xf32>
    %72 = tpu.matmul %69, %71, %cst_55 {dimension_numbers = #tpu.dot_dimension_numbers<[1], [0], [0], [1], [0, 0, 1, 1], [], []>} : vector<64x16xf32>, vector<16x128xf32>, vector<64x128xf32> -> vector<64x128xf32>
    %73 = arith.addf %65, %72 : vector<64x128xf32>
    %c9_i32_56 = arith.constant 9 : i32
    %74 = arith.addi %1, %c9_i32_56 : i32
    %c1_57 = arith.constant 1 : index
    %75 = arith.index_cast %74 : i32 to index
    %c0_58 = arith.constant 0 : index
    %76 = vector.load %arg3[%c1_57, %75, %c0_58] : memref<2x80x16xf32, #tpu.memory_space<vmem>>, vector<1x64x16xf32>
    %77 = vector.shape_cast %76 : vector<1x64x16xf32> to vector<64x16xf32>
    %c3_59 = arith.constant 3 : index
    %c0_60 = arith.constant 0 : index
    %c0_61 = arith.constant 0 : index
    %78 = vector.load %arg4[%c3_59, %c0_60, %c0_61] : memref<4x16x128xf32, #tpu.memory_space<vmem>>, vector<1x16x128xf32>
    %79 = vector.shape_cast %78 : vector<1x16x128xf32> to vector<16x128xf32>
    %cst_62 = arith.constant dense<0.000000e+00> : vector<64x128xf32>
    %80 = tpu.matmul %77, %79, %cst_62 {dimension_numbers = #tpu.dot_dimension_numbers<[1], [0], [0], [1], [0, 0, 1, 1], [], []>} : vector<64x16xf32>, vector<16x128xf32>, vector<64x128xf32> -> vector<64x128xf32>
    %81 = arith.addf %73, %80 : vector<64x128xf32>
    %c1_63 = arith.constant 1 : index
    %c0_64 = arith.constant 0 : index
    %c0_65 = arith.constant 0 : index
    %82 = vector.load %arg5[%c1_63, %c0_64, %c0_65] : memref<2x64x128xf32, #tpu.memory_space<vmem>>, vector<1x64x128xf32>
    %83 = vector.shape_cast %82 : vector<1x64x128xf32> to vector<64x128xf32>
    %84 = vector.shape_cast %81 : vector<64x128xf32> to vector<1x64x128xf32>
    tpu.vector_store %arg5[%c1_63, %c0_64, %c0_65], %84 {strides = array<i32>} : memref<2x64x128xf32, #tpu.memory_space<vmem>>, vector<1x64x128xf32>,
    %cst_66 = arith.constant dense<0.000000e+00> : vector<8x128xf32>
    %85 = tpu.matmul %3, %81, %cst_66 {dimension_numbers = #tpu.dot_dimension_numbers<[1], [0], [0], [1], [0, 0, 1, 1], [], []>} : vector<8x64xf32>, vector<64x128xf32>, vector<8x128xf32> -> vector<8x128xf32>
    %86 = arith.mulf %81, %81 : vector<64x128xf32>
    %cst_67 = arith.constant dense<0.000000e+00> : vector<8x128xf32>
    %87 = tpu.matmul %5, %86, %cst_67 {dimension_numbers = #tpu.dot_dimension_numbers<[1], [0], [0], [1], [0, 0, 1, 1], [], []>} : vector<8x64xf32>, vector<64x128xf32>, vector<8x128xf32> -> vector<8x128xf32>
    %88 = arith.addf %85, %87 : vector<8x128xf32>
    %c1_68 = arith.constant 1 : index
    %c0_69 = arith.constant 0 : index
    %c0_70 = arith.constant 0 : index
    %c0_71 = arith.constant 0 : index
    %89 = vector.load %arg6[%c1_68, %c0_69, %c0_70, %c0_71] : memref<2x1x8x128xf32, #tpu.memory_space<vmem>>, vector<1x1x8x128xf32>
    %90 = vector.shape_cast %89 : vector<1x1x8x128xf32> to vector<8x128xf32>
    %91 = vector.shape_cast %88 : vector<8x128xf32> to vector<1x1x8x128xf32>
    tpu.vector_store %arg6[%c1_68, %c0_69, %c0_70, %c0_71], %91 {strides = array<i32>} : memref<2x1x8x128xf32, #tpu.memory_space<vmem>>, vector<1x1x8x128xf32>,
    return
  }
  func.func @transform_0(%arg0: i32, %arg1: i32) -> (i32, i32, i32) {
    %c0_i32 = arith.constant 0 : i32
    %c0_i32_0 = arith.constant 0 : i32
    %c0_i32_1 = arith.constant 0 : i32
    return %arg1, %c0_i32, %c0_i32_0 : i32, i32, i32
  }
  func.func @transform_1(%arg0: i32, %arg1: i32) -> (i32, i32, i32) {
    %c0_i32 = arith.constant 0 : i32
    %c0_i32_0 = arith.constant 0 : i32
    %c0_i32_1 = arith.constant 0 : i32
    return %arg0, %c0_i32, %c0_i32_0 : i32, i32, i32
  }
  func.func @transform_2(%arg0: i32, %arg1: i32) -> (i32, i32, i32) {
    %c0_i32 = arith.constant 0 : i32
    %c0_i32_0 = arith.constant 0 : i32
    %c0_i32_1 = arith.constant 0 : i32
    %c0_i32_2 = arith.constant 0 : i32
    return %c0_i32, %c0_i32_0, %c0_i32_1 : i32, i32, i32
  }
  func.func @transform_3(%arg0: i32, %arg1: i32) -> (i32, i32, i32) {
    %c0_i32 = arith.constant 0 : i32
    %c0_i32_0 = arith.constant 0 : i32
    return %arg0, %arg1, %c0_i32 : i32, i32, i32
  }
  func.func @transform_4(%arg0: i32, %arg1: i32) -> (i32, i32, i32, i32) {
    %c0_i32 = arith.constant 0 : i32
    %c0_i32_0 = arith.constant 0 : i32
    %c0_i32_1 = arith.constant 0 : i32
    return %arg0, %arg1, %c0_i32, %c0_i32_0 : i32, i32, i32, i32
  }
}

module attributes {stable_mosaic.version = 11 : i64} {
  func.func @_bn_lrelu_kernel(%arg0: i32, %arg1: memref<128x128xf32, #tpu.memory_space<vmem>>, %arg2: memref<1x128xf32, #tpu.memory_space<vmem>>, %arg3: memref<1x128xf32, #tpu.memory_space<vmem>>, %arg4: memref<128x128xf32, #tpu.memory_space<vmem>>) attributes {dimension_semantics = [#tpu.dimension_semantics<parallel>], iteration_bounds = array<i64: 1>, scalar_prefetch = 0 : i64, scratch_operands = 0 : i64, tpu.core_type = #tpu.core_type<tc>, window_params = [{transform_indices = @transform_0, window_bounds = array<i64: 128, 128>}, {pipeline_mode = #tpu.pipeline_mode<synchronous>, transform_indices = @transform_1, window_bounds = array<i64: 1, 128>}, {pipeline_mode = #tpu.pipeline_mode<synchronous>, transform_indices = @transform_2, window_bounds = array<i64: 1, 128>}, {transform_indices = @transform_3, window_bounds = array<i64: 128, 128>}]} {
    %c0 = arith.constant 0 : index
    %c0_0 = arith.constant 0 : index
    %0 = vector.load %arg1[%c0, %c0_0] : memref<128x128xf32, #tpu.memory_space<vmem>>, vector<128x128xf32>
    %c0_1 = arith.constant 0 : index
    %c0_2 = arith.constant 0 : index
    %1 = vector.load %arg2[%c0_1, %c0_2] : memref<1x128xf32, #tpu.memory_space<vmem>>, vector<1x128xf32>
    %2 = vector.broadcast %1 : vector<1x128xf32> to vector<128x128xf32>
    %3 = arith.mulf %0, %2 : vector<128x128xf32>
    %c0_3 = arith.constant 0 : index
    %c0_4 = arith.constant 0 : index
    %4 = vector.load %arg3[%c0_3, %c0_4] : memref<1x128xf32, #tpu.memory_space<vmem>>, vector<1x128xf32>
    %5 = vector.broadcast %4 : vector<1x128xf32> to vector<128x128xf32>
    %6 = arith.addf %3, %5 : vector<128x128xf32>
    %cst = arith.constant 0.000000e+00 : f32
    %7 = vector.broadcast %cst : f32 to vector<128x128xf32>
    %8 = arith.cmpf ogt, %6, %7 : vector<128x128xf32>
    %cst_5 = arith.constant 2.000000e-01 : f32
    %9 = vector.broadcast %cst_5 : f32 to vector<128x128xf32>
    %10 = arith.mulf %9, %6 : vector<128x128xf32>
    %11 = arith.select %8, %6, %10 : vector<128x128xi1>, vector<128x128xf32>
    %c0_6 = arith.constant 0 : index
    %c0_7 = arith.constant 0 : index
    %12 = vector.load %arg4[%c0_6, %c0_7] : memref<128x128xf32, #tpu.memory_space<vmem>>, vector<128x128xf32>
    tpu.vector_store %arg4[%c0_6, %c0_7], %11 {strides = array<i32>} : memref<128x128xf32, #tpu.memory_space<vmem>>, vector<128x128xf32>,
    return
  }
  func.func @transform_0(%arg0: i32) -> (i32, i32) {
    %c0_i32 = arith.constant 0 : i32
    %c0_i32_0 = arith.constant 0 : i32
    return %arg0, %c0_i32 : i32, i32
  }
  func.func @transform_1(%arg0: i32) -> (i32, i32) {
    %c0_i32 = arith.constant 0 : i32
    %c0_i32_0 = arith.constant 0 : i32
    %c0_i32_1 = arith.constant 0 : i32
    return %c0_i32, %c0_i32_0 : i32, i32
  }
  func.func @transform_2(%arg0: i32) -> (i32, i32) {
    %c0_i32 = arith.constant 0 : i32
    %c0_i32_0 = arith.constant 0 : i32
    %c0_i32_1 = arith.constant 0 : i32
    return %c0_i32, %c0_i32_0 : i32, i32
  }
  func.func @transform_3(%arg0: i32) -> (i32, i32) {
    %c0_i32 = arith.constant 0 : i32
    %c0_i32_0 = arith.constant 0 : i32
    return %arg0, %c0_i32 : i32, i32
  }
}

</mosaic_0001>

<llo_original>
// kernel: forward.3
$region0: #{forward.3}
  #allocation0 [shape = 'u32[]', space=smem, size = 0x4, offset = 0x4, fixed_abs, tag = 'smem constant byte address 0x4 - core index']
  #allocation1 [shape = 'u32[144,128]{1,0:T(1,128)}', space=vmem, size = 0x12000, scoped, tag = 'internal scratch']
  %s0 = inlined_call_operand.vmem [shape: f32[128,128], index: 0, kind: input, shape index: {}]
  %s1 = inlined_call_operand.vmem [shape: f32[1,128], index: 1, kind: input, shape index: {}]
  %s2 = inlined_call_operand.vmem [shape: f32[1,128], index: 2, kind: input, shape index: {}]
  %s3 = inlined_call_operand.vmem [shape: f32[128,128], index: 3, kind: output, shape index: {}]
  %s4 = sld [smem:[#allocation0]]
  $region22: #{forward.3} parent=0
    _
  %s6 = ssub.s32 1, %s4
  %s7 = scalar_select 0, %s6, %s4
  // Predicated region
  $region2: #{forward.3} parent=0 // pred_check
    _
  $region3: #{forward.3} parent=0 // pred_check_branch
    %9 = sbr.rel (0) target = $region5
  $region4: #{forward.3} parent=0 // pred_region
    _
  $region5: #{forward.3} parent=0 // pred_fallthru
    _
  // Predicated region
  $region6: #{forward.3} parent=0 // pred_check
    _
  $region7: #{forward.3} parent=0 // pred_check_branch
    %11 = sbr.rel (0) target = $region9
  $region8: #{forward.3} parent=0 // pred_region
    _
  $region9: #{forward.3} parent=0 // pred_fallthru
    _
  // Predicated region
  $region10: #{forward.3} parent=0 // pred_check
    _
  $region11: #{forward.3} parent=0 // pred_check_branch
    %13 = sbr.rel (0) target = $region13
  $region12: #{forward.3} parent=0 // pred_region
    _
  $region13: #{forward.3} parent=0 // pred_fallthru
    _
  %v14 = vld [vmem:[%s0] sm:$0xff]
  %v15 = vld [vmem:[%s0 + $0x8] sm:$0xff]
  %v16 = vld [vmem:[%s0 + $0x10] sm:$0xff]
  %v17 = vld [vmem:[%s0 + $0x18] sm:$0xff]
  %v18 = vld [vmem:[%s0 + $0x20] sm:$0xff]
  %v19 = vld [vmem:[%s0 + $0x28] sm:$0xff]
  %v20 = vld [vmem:[%s0 + $0x30] sm:$0xff]
  %v21 = vld [vmem:[%s0 + $0x38] sm:$0xff]
  %v22 = vld [vmem:[%s0 + $0x40] sm:$0xff]
  %v23 = vld [vmem:[%s0 + $0x48] sm:$0xff]
  %v24 = vld [vmem:[%s0 + $0x50] sm:$0xff]
  %v25 = vld [vmem:[%s0 + $0x58] sm:$0xff]
  %v26 = vld [vmem:[%s0 + $0x60] sm:$0xff]
  %v27 = vld [vmem:[%s0 + $0x68] sm:$0xff]
  %v28 = vld [vmem:[%s0 + $0x70] sm:$0xff]
  %v29 = vld [vmem:[%s0 + $0x78] sm:$0xff]
  %v30 = vld [vmem:[%s1] sm:$0x1]
  %v32 = vlaneseq
  %v33 = vshrl.u32 %v32, 7
  %v34 = vsub.s32 0, %v33
  %v35 = vrot.slane %v30, %v34
  %v37 = vmul.f32 %v14, %v35
  %v38 = vmul.f32 %v15, %v35
  %v39 = vmul.f32 %v16, %v35
  %v40 = vmul.f32 %v17, %v35
  %v41 = vmul.f32 %v18, %v35
  %v42 = vmul.f32 %v19, %v35
  %v43 = vmul.f32 %v20, %v35
  %v44 = vmul.f32 %v21, %v35
  %v45 = vmul.f32 %v22, %v35
  %v46 = vmul.f32 %v23, %v35
  %v47 = vmul.f32 %v24, %v35
  %v48 = vmul.f32 %v25, %v35
  %v49 = vmul.f32 %v26, %v35
  %v50 = vmul.f32 %v27, %v35
  %v51 = vmul.f32 %v28, %v35
  %v52 = vmul.f32 %v29, %v35
  %v53 = vld [vmem:[%s2] sm:$0x1]
  %v55 = vlaneseq
  %v56 = vshrl.u32 %v55, 7
  %v57 = vsub.s32 0, %v56
  %v58 = vrot.slane %v53, %v57
  %v60 = vadd.f32 %v37, %v58
  %v61 = vadd.f32 %v38, %v58
  %v62 = vadd.f32 %v39, %v58
  %v63 = vadd.f32 %v40, %v58
  %v64 = vadd.f32 %v41, %v58
  %v65 = vadd.f32 %v42, %v58
  %v66 = vadd.f32 %v43, %v58
  %v67 = vadd.f32 %v44, %v58
  %v68 = vadd.f32 %v45, %v58
  %v69 = vadd.f32 %v46, %v58
  %v70 = vadd.f32 %v47, %v58
  %v71 = vadd.f32 %v48, %v58
  %v72 = vadd.f32 %v49, %v58
  %v73 = vadd.f32 %v50, %v58
  %v74 = vadd.f32 %v51, %v58
  %v75 = vadd.f32 %v52, %v58
  %vm76 = vcmp.gt.f32.partialorder %v60, 0.0
  %vm77 = vcmp.gt.f32.partialorder %v61, 0.0
  %vm78 = vcmp.gt.f32.partialorder %v62, 0.0
  %vm79 = vcmp.gt.f32.partialorder %v63, 0.0
  %vm80 = vcmp.gt.f32.partialorder %v64, 0.0
  %vm81 = vcmp.gt.f32.partialorder %v65, 0.0
  %vm82 = vcmp.gt.f32.partialorder %v66, 0.0
  %vm83 = vcmp.gt.f32.partialorder %v67, 0.0
  %vm84 = vcmp.gt.f32.partialorder %v68, 0.0
  %vm85 = vcmp.gt.f32.partialorder %v69, 0.0
  %vm86 = vcmp.gt.f32.partialorder %v70, 0.0
  %vm87 = vcmp.gt.f32.partialorder %v71, 0.0
  %vm88 = vcmp.gt.f32.partialorder %v72, 0.0
  %vm89 = vcmp.gt.f32.partialorder %v73, 0.0
  %vm90 = vcmp.gt.f32.partialorder %v74, 0.0
  %vm91 = vcmp.gt.f32.partialorder %v75, 0.0
  %v92 = vmul.f32 %v60, 0.2
  %v93 = vmul.f32 %v61, 0.2
  %v94 = vmul.f32 %v62, 0.2
  %v95 = vmul.f32 %v63, 0.2
  %v96 = vmul.f32 %v64, 0.2
  %v97 = vmul.f32 %v65, 0.2
  %v98 = vmul.f32 %v66, 0.2
  %v99 = vmul.f32 %v67, 0.2
  %v100 = vmul.f32 %v68, 0.2
  %v101 = vmul.f32 %v69, 0.2
  %v102 = vmul.f32 %v70, 0.2
  %v103 = vmul.f32 %v71, 0.2
  %v104 = vmul.f32 %v72, 0.2
  %v105 = vmul.f32 %v73, 0.2
  %v106 = vmul.f32 %v74, 0.2
  %v107 = vmul.f32 %v75, 0.2
  %v108 = vsel %vm76, %v60, %v92
  %v109 = vsel %vm77, %v61, %v93
  %v110 = vsel %vm78, %v62, %v94
  %v111 = vsel %vm79, %v63, %v95
  %v112 = vsel %vm80, %v64, %v96
  %v113 = vsel %vm81, %v65, %v97
  %v114 = vsel %vm82, %v66, %v98
  %v115 = vsel %vm83, %v67, %v99
  %v116 = vsel %vm84, %v68, %v100
  %v117 = vsel %vm85, %v69, %v101
  %v118 = vsel %vm86, %v70, %v102
  %v119 = vsel %vm87, %v71, %v103
  %v120 = vsel %vm88, %v72, %v104
  %v121 = vsel %vm89, %v73, %v105
  %v122 = vsel %vm90, %v74, %v106
  %v123 = vsel %vm91, %v75, %v107
  %124 = vst [vmem:[%s3] sm:$0xff] %v108
  %125 = vst [vmem:[%s3 + $0x8] sm:$0xff] %v109
  %126 = vst [vmem:[%s3 + $0x10] sm:$0xff] %v110
  %127 = vst [vmem:[%s3 + $0x18] sm:$0xff] %v111
  %128 = vst [vmem:[%s3 + $0x20] sm:$0xff] %v112
  %129 = vst [vmem:[%s3 + $0x28] sm:$0xff] %v113
  %130 = vst [vmem:[%s3 + $0x30] sm:$0xff] %v114
  %131 = vst [vmem:[%s3 + $0x38] sm:$0xff] %v115
  %132 = vst [vmem:[%s3 + $0x40] sm:$0xff] %v116
  %133 = vst [vmem:[%s3 + $0x48] sm:$0xff] %v117
  %134 = vst [vmem:[%s3 + $0x50] sm:$0xff] %v118
  %135 = vst [vmem:[%s3 + $0x58] sm:$0xff] %v119
  %136 = vst [vmem:[%s3 + $0x60] sm:$0xff] %v120
  %137 = vst [vmem:[%s3 + $0x68] sm:$0xff] %v121
  %138 = vst [vmem:[%s3 + $0x70] sm:$0xff] %v122
  %139 = vst [vmem:[%s3 + $0x78] sm:$0xff] %v123
  // Predicated region
  $region14: #{forward.3} parent=0 // pred_check
    _
  $region15: #{forward.3} parent=0 // pred_check_branch
    %141 = sbr.rel (0) target = $region17
  $region16: #{forward.3} parent=0 // pred_region
    _
  $region17: #{forward.3} parent=0 // pred_fallthru
    _
  // Predicated region
  $region18: #{forward.3} parent=0 // pred_check
    _
  $region19: #{forward.3} parent=0 // pred_check_branch
    %143 = sbr.rel (0) target = $region21
  $region20: #{forward.3} parent=0 // pred_region
    _
  $region21: #{forward.3} parent=0 // pred_fallthru
    _

// kernel: forward.2
$region0: #{forward.2}
  #allocation0 [shape = 'u32[]', space=smem, size = 0x4, offset = 0x4, fixed_abs, tag = 'smem constant byte address 0x4 - core index']
  #allocation1 [shape = 'u32[144,128]{1,0:T(1,128)}', space=vmem, size = 0x12000, scoped, tag = 'internal scratch']
  %s0 = inlined_call_operand.vmem [shape: f32[1,16,64], index: 0, kind: input, shape index: {}]
  %s1 = inlined_call_operand.vmem [shape: f32[2,80,16], index: 1, kind: input, shape index: {}]
  %s2 = inlined_call_operand.vmem [shape: f32[4,16,128], index: 2, kind: input, shape index: {}]
  %s3 = inlined_call_operand.vmem [shape: f32[2,64,128], index: 3, kind: output, shape index: {0}]
  %s4 = inlined_call_operand.vmem [shape: f32[2,1,8,128], index: 4, kind: output, shape index: {1}]
  %5 = xla_tuple %s3, %s4
  %s6 = sld [smem:[#allocation0]]
  $region30: #{forward.2} parent=0
    _
  %s8 = ssub.s32 1, %s6
  %s9 = scalar_select 0, %s8, %s6
  // Predicated region
  $region2: #{forward.2} parent=0 // pred_check
    _
  $region3: #{forward.2} parent=0 // pred_check_branch
    %11 = sbr.rel (0) target = $region5
  $region4: #{forward.2} parent=0 // pred_region
    _
  $region5: #{forward.2} parent=0 // pred_fallthru
    _
  // Predicated region
  $region6: #{forward.2} parent=0 // pred_check
    _
  $region7: #{forward.2} parent=0 // pred_check_branch
    %13 = sbr.rel (0) target = $region9
  $region8: #{forward.2} parent=0 // pred_region
    _
  $region9: #{forward.2} parent=0 // pred_fallthru
    _
  // Predicated region
  $region10: #{forward.2} parent=0 // pred_check
    _
  $region11: #{forward.2} parent=0 // pred_check_branch
    %15 = sbr.rel (0) target = $region13
  $region12: #{forward.2} parent=0 // pred_region
    _
  $region13: #{forward.2} parent=0 // pred_fallthru
    _
  %s16 = smul.u32 0, 64
  %v17 = vld [vmem:[%s0] sm:$0xff]
  %v18 = vld [vmem:[%s0 + $0x8] sm:$0xff]
  %s19 = scalar_lea.vmem %s1, %s16
  %v20 = vld [vmem:[%s19] sm:$0xff]
  %v21 = vld [vmem:[%s19 + $0x8] sm:$0xff]
  %v22 = vld [vmem:[%s19 + $0x10] sm:$0xff]
  %v23 = vld [vmem:[%s19 + $0x18] sm:$0xff]
  %v24 = vld [vmem:[%s19 + $0x20] sm:$0xff]
  %v25 = vld [vmem:[%s19 + $0x28] sm:$0xff]
  %v26 = vld [vmem:[%s19 + $0x30] sm:$0xff]
  %v27 = vld [vmem:[%s19 + $0x38] sm:$0xff]
  %v28 = vld [vmem:[%s2] sm:$0xff]
  %v29 = vld [vmem:[%s2 + $0x8] sm:$0xff]
  %s30 = sadd.s32 %s16, 1
  %s31 = scalar_lea.vmem %s1, %s30
  %v32 = vld [vmem:[%s31] sm:$0xff]
  %v33 = vld [vmem:[%s31 + $0x8] sm:$0xff]
  %v34 = vld [vmem:[%s31 + $0x10] sm:$0xff]
  %v35 = vld [vmem:[%s31 + $0x18] sm:$0xff]
  %v36 = vld [vmem:[%s31 + $0x20] sm:$0xff]
  %v37 = vld [vmem:[%s31 + $0x28] sm:$0xff]
  %v38 = vld [vmem:[%s31 + $0x30] sm:$0xff]
  %v39 = vld [vmem:[%s31 + $0x38] sm:$0xff]
  %s40 = scalar_lea.vmem %s2, 16
  %v41 = vld [vmem:[%s40] sm:$0xff]
  %v42 = vld [vmem:[%s40 + $0x8] sm:$0xff]
  %vm43 = vcmask 130048
  %v45 = vsel %vm43, %v32, 0
  %v48 = vsel %vm43, %v33, 0
  %v51 = vsel %vm43, %v34, 0
  %v54 = vsel %vm43, %v35, 0
  %v57 = vsel %vm43, %v36, 0
  %v60 = vsel %vm43, %v37, 0
  %v63 = vsel %vm43, %v38, 0
  %v66 = vsel %vm43, %v39, 0
  %68 = vmatprep.subr.mxu0 0.0
  %69 = vmatpush1.msra.mxu0 %v41
  %70 = vmatprep.subr.mxu0 0.0
  %71 = vmatpush1.msra.mxu0 %v42
  %72 = vmatprep.subr.mxu0 0.0
  %73 = vmatpush1.msra.mxu0 0.0
  %74 = vmatprep.subr.mxu0 0.0
  %75 = vmatpush1.msra.mxu0 0.0
  %76 = vmatprep.subr.mxu0 0.0
  %77 = vmatpush1.msra.mxu0 0.0
  %78 = vmatprep.subr.mxu0 0.0
  %79 = vmatpush1.msra.mxu0 0.0
  %80 = vmatprep.subr.mxu0 0.0
  %81 = vmatpush1.msra.mxu0 0.0
  %82 = vmatprep.subr.mxu0 0.0
  %83 = vmatpush1.msra.mxu0 0.0
  %84 = vmatprep.subr.mxu0 0.0
  %85 = vmatpush1.msra.mxu0 0.0
  %86 = vmatprep.subr.mxu0 0.0
  %87 = vmatpush1.msra.mxu0 0.0
  %88 = vmatprep.subr.mxu0 0.0
  %89 = vmatpush1.msra.mxu0 0.0
  %90 = vmatprep.subr.mxu0 0.0
  %91 = vmatpush1.msra.mxu0 0.0
  %92 = vmatprep.subr.mxu0 0.0
  %93 = vmatpush1.msra.mxu0 0.0
  %94 = vmatprep.subr.mxu0 0.0
  %95 = vmatpush1.msra.mxu0 0.0
  %96 = vmatprep.subr.mxu0 0.0
  %97 = vmatpush1.msra.mxu0 0.0
  %98 = vmatprep.subr.mxu0 0.0
  %99 = vmatpush1.msra.mxu0 0.0
  %100 = vmatprep.subr.mxu0 0.0
  %101 = vmatpush1.msra.mxu0 0.0
  %102 = vmatprep.subr.mxu0 0.0
  %103 = vmatpush1.msra.mxu0 0.0
  %104 = vmatprep.subr.mxu0 0.0
  %105 = vmatpush1.msra.mxu0 0.0
  %106 = vmatprep.subr.mxu0 0.0
  %107 = vmatpush1.msra.mxu0 0.0
  %108 = vmatprep.subr.mxu0 0.0
  %109 = vmatpush1.msra.mxu0 0.0
  %110 = vmatprep.subr.mxu0 0.0
  %111 = vmatpush1.msra.mxu0 0.0
  %112 = vmatprep.subr.mxu0 0.0
  %113 = vmatpush1.msra.mxu0 0.0
  %114 = vmatprep.subr.mxu0 0.0
  %115 = vmatpush1.msra.mxu0 0.0
  %116 = vmatprep.subr.mxu0 0.0
  %117 = vmatpush1.msra.mxu0 0.0
  %118 = vmatprep.subr.mxu0 0.0
  %119 = vmatpush1.msra.mxu0 0.0
  %120 = vmatprep.subr.mxu0 0.0
  %121 = vmatpush1.msra.mxu0 0.0
  %122 = vmatprep.subr.mxu0 0.0
  %123 = vmatpush1.msra.mxu0 0.0
  %124 = vmatprep.subr.mxu0 0.0
  %125 = vmatpush1.msra.mxu0 0.0
  %126 = vmatprep.subr.mxu0 0.0
  %127 = vmatpush1.msra.mxu0 0.0
  %128 = vmatprep.subr.mxu0 0.0
  %129 = vmatpush1.msra.mxu0 0.0
  %130 = vmatprep.subr.mxu0 0.0
  %131 = vmatpush1.msra.mxu0 0.0
  %132 = vmatprep.mubr.f32.mxu0 0.0
  %133 = vmatmul.mubr.f32.gmra.mrb[0].mxu0 %v45
  %v134 = vpop.f32.mrb[0].mxu0
  %v135 = vadd.f32 0.0, %v134
  %v136 = vpop.f32.mrb[0].mxu0
  %137 = vmatprep.mubr.f32.mxu0 0.0
  %138 = vmatmul.mubr.f32.gmra.mrb[0].mxu0 %v48
  %v139 = vpop.f32.mrb[0].mxu0
  %v140 = vadd.f32 0.0, %v139
  %v141 = vpop.f32.mrb[0].mxu0
  %142 = vmatprep.mubr.f32.mxu0 0.0
  %143 = vmatmul.mubr.f32.gmra.mrb[0].mxu0 %v51
  %v144 = vpop.f32.mrb[0].mxu0
  %v145 = vadd.f32 0.0, %v144
  %v146 = vpop.f32.mrb[0].mxu0
  %147 = vmatprep.mubr.f32.mxu0 0.0
  %148 = vmatmul.mubr.f32.gmra.mrb[0].mxu0 %v54
  %v149 = vpop.f32.mrb[0].mxu0
  %v150 = vadd.f32 0.0, %v149
  %v151 = vpop.f32.mrb[0].mxu0
  %152 = vmatprep.mubr.f32.mxu0 0.0
  %153 = vmatmul.mubr.f32.gmra.mrb[0].mxu0 %v57
  %v154 = vpop.f32.mrb[0].mxu0
  %v155 = vadd.f32 0.0, %v154
  %v156 = vpop.f32.mrb[0].mxu0
  %157 = vmatprep.mubr.f32.mxu0 0.0
  %158 = vmatmul.mubr.f32.gmra.mrb[0].mxu0 %v60
  %v159 = vpop.f32.mrb[0].mxu0
  %v160 = vadd.f32 0.0, %v159
  %v161 = vpop.f32.mrb[0].mxu0
  %162 = vmatprep.mubr.f32.mxu0 0.0
  %163 = vmatmul.mubr.f32.gmra.mrb[0].mxu0 %v63
  %v164 = vpop.f32.mrb[0].mxu0
  %v165 = vadd.f32 0.0, %v164
  %v166 = vpop.f32.mrb[0].mxu0
  %167 = vmatprep.mubr.f32.mxu0 0.0
  %168 = vmatmul.mubr.f32.gmra.mrb[0].mxu0 %v66
  %v169 = vpop.f32.mrb[0].mxu0
  %v170 = vadd.f32 0.0, %v169
  %v171 = vpop.f32.mrb[0].mxu0
  %172 = vdwg.mxu0
  %v174 = vsel %vm43, %v20, 0
  %v177 = vsel %vm43, %v21, 0
  %v180 = vsel %vm43, %v22, 0
  %v183 = vsel %vm43, %v23, 0
  %v186 = vsel %vm43, %v24, 0
  %v189 = vsel %vm43, %v25, 0
  %v192 = vsel %vm43, %v26, 0
  %v195 = vsel %vm43, %v27, 0
  %197 = vmatprep.subr.mxu0 0.0
  %198 = vmatpush1.msra.mxu0 %v28
  %199 = vmatprep.subr.mxu0 0.0
  %200 = vmatpush1.msra.mxu0 %v29
  %201 = vmatprep.subr.mxu0 0.0
  %202 = vmatpush1.msra.mxu0 0.0
  %203 = vmatprep.subr.mxu0 0.0
  %204 = vmatpush1.msra.mxu0 0.0
  %205 = vmatprep.subr.mxu0 0.0
  %206 = vmatpush1.msra.mxu0 0.0
  %207 = vmatprep.subr.mxu0 0.0
  %208 = vmatpush1.msra.mxu0 0.0
  %209 = vmatprep.subr.mxu0 0.0
  %210 = vmatpush1.msra.mxu0 0.0
  %211 = vmatprep.subr.mxu0 0.0
  %212 = vmatpush1.msra.mxu0 0.0
  %213 = vmatprep.subr.mxu0 0.0
  %214 = vmatpush1.msra.mxu0 0.0
  %215 = vmatprep.subr.mxu0 0.0
  %216 = vmatpush1.msra.mxu0 0.0
  %217 = vmatprep.subr.mxu0 0.0
  %218 = vmatpush1.msra.mxu0 0.0
  %219 = vmatprep.subr.mxu0 0.0
  %220 = vmatpush1.msra.mxu0 0.0
  %221 = vmatprep.subr.mxu0 0.0
  %222 = vmatpush1.msra.mxu0 0.0
  %223 = vmatprep.subr.mxu0 0.0
  %224 = vmatpush1.msra.mxu0 0.0
  %225 = vmatprep.subr.mxu0 0.0
  %226 = vmatpush1.msra.mxu0 0.0
  %227 = vmatprep.subr.mxu0 0.0
  %228 = vmatpush1.msra.mxu0 0.0
  %229 = vmatprep.subr.mxu0 0.0
  %230 = vmatpush1.msra.mxu0 0.0
  %231 = vmatprep.subr.mxu0 0.0
  %232 = vmatpush1.msra.mxu0 0.0
  %233 = vmatprep.subr.mxu0 0.0
  %234 = vmatpush1.msra.mxu0 0.0
  %235 = vmatprep.subr.mxu0 0.0
  %236 = vmatpush1.msra.mxu0 0.0
  %237 = vmatprep.subr.mxu0 0.0
  %238 = vmatpush1.msra.mxu0 0.0
  %239 = vmatprep.subr.mxu0 0.0
  %240 = vmatpush1.msra.mxu0 0.0
  %241 = vmatprep.subr.mxu0 0.0
  %242 = vmatpush1.msra.mxu0 0.0
  %243 = vmatprep.subr.mxu0 0.0
  %244 = vmatpush1.msra.mxu0 0.0
  %245 = vmatprep.subr.mxu0 0.0
  %246 = vmatpush1.msra.mxu0 0.0
  %247 = vmatprep.subr.mxu0 0.0
  %248 = vmatpush1.msra.mxu0 0.0
  %249 = vmatprep.subr.mxu0 0.0
  %250 = vmatpush1.msra.mxu0 0.0
  %251 = vmatprep.subr.mxu0 0.0
  %252 = vmatpush1.msra.mxu0 0.0
  %253 = vmatprep.subr.mxu0 0.0
  %254 = vmatpush1.msra.mxu0 0.0
  %255 = vmatprep.subr.mxu0 0.0
  %256 = vmatpush1.msra.mxu0 0.0
  %257 = vmatprep.subr.mxu0 0.0
  %258 = vmatpush1.msra.mxu0 0.0
  %259 = vmatprep.subr.mxu0 0.0
  %260 = vmatpush1.msra.mxu0 0.0
  %261 = vmatprep.mubr.f32.mxu0 0.0
  %262 = vmatmul.mubr.f32.gmra.mrb[0].mxu0 %v174
  %v263 = vpop.f32.mrb[0].mxu0
  %v264 = vadd.f32 %v135, %v263
  %v265 = vpop.f32.mrb[0].mxu0
  %266 = vmatprep.mubr.f32.mxu0 0.0
  %267 = vmatmul.mubr.f32.gmra.mrb[0].mxu0 %v177
  %v268 = vpop.f32.mrb[0].mxu0
  %v269 = vadd.f32 %v140, %v268
  %v270 = vpop.f32.mrb[0].mxu0
  %271 = vmatprep.mubr.f32.mxu0 0.0
  %272 = vmatmul.mubr.f32.gmra.mrb[0].mxu0 %v180
  %v273 = vpop.f32.mrb[0].mxu0
  %v274 = vadd.f32 %v145, %v273
  %v275 = vpop.f32.mrb[0].mxu0
  %276 = vmatprep.mubr.f32.mxu0 0.0
  %277 = vmatmul.mubr.f32.gmra.mrb[0].mxu0 %v183
  %v278 = vpop.f32.mrb[0].mxu0
  %v279 = vadd.f32 %v150, %v278
  %v280 = vpop.f32.mrb[0].mxu0
  %281 = vmatprep.mubr.f32.mxu0 0.0
  %282 = vmatmul.mubr.f32.gmra.mrb[0].mxu0 %v186
  %v283 = vpop.f32.mrb[0].mxu0
  %v284 = vadd.f32 %v155, %v283
  %v285 = vpop.f32.mrb[0].mxu0
  %286 = vmatprep.mubr.f32.mxu0 0.0
  %287 = vmatmul.mubr.f32.gmra.mrb[0].mxu0 %v189
  %v288 = vpop.f32.mrb[0].mxu0
  %v289 = vadd.f32 %v160, %v288
  %v290 = vpop.f32.mrb[0].mxu0
  %291 = vmatprep.mubr.f32.mxu0 0.0
  %292 = vmatmul.mubr.f32.gmra.mrb[0].mxu0 %v192
  %v293 = vpop.f32.mrb[0].mxu0
  %v294 = vadd.f32 %v165, %v293
  %v295 = vpop.f32.mrb[0].mxu0
  %296 = vmatprep.mubr.f32.mxu0 0.0
  %297 = vmatmul.mubr.f32.gmra.mrb[0].mxu0 %v195
  %v298 = vpop.f32.mrb[0].mxu0
  %v299 = vadd.f32 %v170, %v298
  %v300 = vpop.f32.mrb[0].mxu0
  %301 = vdwg.mxu0
  %s302 = sadd.s32 %s16, 8
  %s303 = scalar_lea.vmem %s1, %s302
  %v304 = vld [vmem:[%s303] sm:$0xff]
  %v305 = vld [vmem:[%s303 + $0x8] sm:$0xff]
  %v306 = vld [vmem:[%s303 + $0x10] sm:$0xff]
  %v307 = vld [vmem:[%s303 + $0x18] sm:$0xff]
  %v308 = vld [vmem:[%s303 + $0x20] sm:$0xff]
  %v309 = vld [vmem:[%s303 + $0x28] sm:$0xff]
  %v310 = vld [vmem:[%s303 + $0x30] sm:$0xff]
  %v311 = vld [vmem:[%s303 + $0x38] sm:$0xff]
  %s312 = scalar_lea.vmem %s2, 32
  %v313 = vld [vmem:[%s312] sm:$0xff]
  %v314 = vld [vmem:[%s312 + $0x8] sm:$0xff]
  %v316 = vsel %vm43, %v304, 0
  %v319 = vsel %vm43, %v305, 0
  %v322 = vsel %vm43, %v306, 0
  %v325 = vsel %vm43, %v307, 0
  %v328 = vsel %vm43, %v308, 0
  %v331 = vsel %vm43, %v309, 0
  %v334 = vsel %vm43, %v310, 0
  %v337 = vsel %vm43, %v311, 0
  %339 = vmatprep.subr.mxu0 0.0
  %340 = vmatpush1.msra.mxu0 %v313
  %341 = vmatprep.subr.mxu0 0.0
  %342 = vmatpush1.msra.mxu0 %v314
  %343 = vmatprep.subr.mxu0 0.0
  %344 = vmatpush1.msra.mxu0 0.0
  %345 = vmatprep.subr.mxu0 0.0
  %346 = vmatpush1.msra.mxu0 0.0
  %347 = vmatprep.subr.mxu0 0.0
  %348 = vmatpush1.msra.mxu0 0.0
  %349 = vmatprep.subr.mxu0 0.0
  %350 = vmatpush1.msra.mxu0 0.0
  %351 = vmatprep.subr.mxu0 0.0
  %352 = vmatpush1.msra.mxu0 0.0
  %353 = vmatprep.subr.mxu0 0.0
  %354 = vmatpush1.msra.mxu0 0.0
  %355 = vmatprep.subr.mxu0 0.0
  %356 = vmatpush1.msra.mxu0 0.0
  %357 = vmatprep.subr.mxu0 0.0
  %358 = vmatpush1.msra.mxu0 0.0
  %359 = vmatprep.subr.mxu0 0.0
  %360 = vmatpush1.msra.mxu0 0.0
  %361 = vmatprep.subr.mxu0 0.0
  %362 = vmatpush1.msra.mxu0 0.0
  %363 = vmatprep.subr.mxu0 0.0
  %364 = vmatpush1.msra.mxu0 0.0
  %365 = vmatprep.subr.mxu0 0.0
  %366 = vmatpush1.msra.mxu0 0.0
  %367 = vmatprep.subr.mxu0 0.0
  %368 = vmatpush1.msra.mxu0 0.0
  %369 = vmatprep.subr.mxu0 0.0
  %370 = vmatpush1.msra.mxu0 0.0
  %371 = vmatprep.subr.mxu0 0.0
  %372 = vmatpush1.msra.mxu0 0.0
  %373 = vmatprep.subr.mxu0 0.0
  %374 = vmatpush1.msra.mxu0 0.0
  %375 = vmatprep.subr.mxu0 0.0
  %376 = vmatpush1.msra.mxu0 0.0
  %377 = vmatprep.subr.mxu0 0.0
  %378 = vmatpush1.msra.mxu0 0.0
  %379 = vmatprep.subr.mxu0 0.0
  %380 = vmatpush1.msra.mxu0 0.0
  %381 = vmatprep.subr.mxu0 0.0
  %382 = vmatpush1.msra.mxu0 0.0
  %383 = vmatprep.subr.mxu0 0.0
  %384 = vmatpush1.msra.mxu0 0.0
  %385 = vmatprep.subr.mxu0 0.0
  %386 = vmatpush1.msra.mxu0 0.0
  %387 = vmatprep.subr.mxu0 0.0
  %388 = vmatpush1.msra.mxu0 0.0
  %389 = vmatprep.subr.mxu0 0.0
  %390 = vmatpush1.msra.mxu0 0.0
  %391 = vmatprep.subr.mxu0 0.0
  %392 = vmatpush1.msra.mxu0 0.0
  %393 = vmatprep.subr.mxu0 0.0
  %394 = vmatpush1.msra.mxu0 0.0
  %395 = vmatprep.subr.mxu0 0.0
  %396 = vmatpush1.msra.mxu0 0.0
  %397 = vmatprep.subr.mxu0 0.0
  %398 = vmatpush1.msra.mxu0 0.0
  %399 = vmatprep.subr.mxu0 0.0
  %400 = vmatpush1.msra.mxu0 0.0
  %401 = vmatprep.subr.mxu0 0.0
  %402 = vmatpush1.msra.mxu0 0.0
  %403 = vmatprep.mubr.f32.mxu0 0.0
  %404 = vmatmul.mubr.f32.gmra.mrb[0].mxu0 %v316
  %v405 = vpop.f32.mrb[0].mxu0
  %v406 = vadd.f32 0.0, %v405
  %v407 = vpop.f32.mrb[0].mxu0
  %408 = vmatprep.mubr.f32.mxu0 0.0
  %409 = vmatmul.mubr.f32.gmra.mrb[0].mxu0 %v319
  %v410 = vpop.f32.mrb[0].mxu0
  %v411 = vadd.f32 0.0, %v410
  %v412 = vpop.f32.mrb[0].mxu0
  %413 = vmatprep.mubr.f32.mxu0 0.0
  %414 = vmatmul.mubr.f32.gmra.mrb[0].mxu0 %v322
  %v415 = vpop.f32.mrb[0].mxu0
  %v416 = vadd.f32 0.0, %v415
  %v417 = vpop.f32.mrb[0].mxu0
  %418 = vmatprep.mubr.f32.mxu0 0.0
  %419 = vmatmul.mubr.f32.gmra.mrb[0].mxu0 %v325
  %v420 = vpop.f32.mrb[0].mxu0
  %v421 = vadd.f32 0.0, %v420
  %v422 = vpop.f32.mrb[0].mxu0
  %423 = vmatprep.mubr.f32.mxu0 0.0
  %424 = vmatmul.mubr.f32.gmra.mrb[0].mxu0 %v328
  %v425 = vpop.f32.mrb[0].mxu0
  %v426 = vadd.f32 0.0, %v425
  %v427 = vpop.f32.mrb[0].mxu0
  %428 = vmatprep.mubr.f32.mxu0 0.0
  %429 = vmatmul.mubr.f32.gmra.mrb[0].mxu0 %v331
  %v430 = vpop.f32.mrb[0].mxu0
  %v431 = vadd.f32 0.0, %v430
  %v432 = vpop.f32.mrb[0].mxu0
  %433 = vmatprep.mubr.f32.mxu0 0.0
  %434 = vmatmul.mubr.f32.gmra.mrb[0].mxu0 %v334
  %v435 = vpop.f32.mrb[0].mxu0
  %v436 = vadd.f32 0.0, %v435
  %v437 = vpop.f32.mrb[0].mxu0
  %438 = vmatprep.mubr.f32.mxu0 0.0
  %439 = vmatmul.mubr.f32.gmra.mrb[0].mxu0 %v337
  %v440 = vpop.f32.mrb[0].mxu0
  %v441 = vadd.f32 0.0, %v440
  %v442 = vpop.f32.mrb[0].mxu0
  %443 = vdwg.mxu0
  %v444 = vadd.f32 %v264, %v406
  %v445 = vadd.f32 %v269, %v411
  %v446 = vadd.f32 %v274, %v416
  %v447 = vadd.f32 %v279, %v421
  %v448 = vadd.f32 %v284, %v426
  %v449 = vadd.f32 %v289, %v431
  %v450 = vadd.f32 %v294, %v436
  %v451 = vadd.f32 %v299, %v441
  %s452 = sadd.s32 %s16, 9
  %s453 = scalar_lea.vmem %s1, %s452
  %v454 = vld [vmem:[%s453] sm:$0xff]
  %v455 = vld [vmem:[%s453 + $0x8] sm:$0xff]
  %v456 = vld [vmem:[%s453 + $0x10] sm:$0xff]
  %v457 = vld [vmem:[%s453 + $0x18] sm:$0xff]
  %v458 = vld [vmem:[%s453 + $0x20] sm:$0xff]
  %v459 = vld [vmem:[%s453 + $0x28] sm:$0xff]
  %v460 = vld [vmem:[%s453 + $0x30] sm:$0xff]
  %v461 = vld [vmem:[%s453 + $0x38] sm:$0xff]
  %s462 = scalar_lea.vmem %s2, 48
  %v463 = vld [vmem:[%s462] sm:$0xff]
  %v464 = vld [vmem:[%s462 + $0x8] sm:$0xff]
  %v466 = vsel %vm43, %v454, 0
  %v469 = vsel %vm43, %v455, 0
  %v472 = vsel %vm43, %v456, 0
  %v475 = vsel %vm43, %v457, 0
  %v478 = vsel %vm43, %v458, 0
  %v481 = vsel %vm43, %v459, 0
  %v484 = vsel %vm43, %v460, 0
  %v487 = vsel %vm43, %v461, 0
  %489 = vmatprep.subr.mxu0 0.0
  %490 = vmatpush1.msra.mxu0 %v463
  %491 = vmatprep.subr.mxu0 0.0
  %492 = vmatpush1.msra.mxu0 %v464
  %493 = vmatprep.subr.mxu0 0.0
  %494 = vmatpush1.msra.mxu0 0.0
  %495 = vmatprep.subr.mxu0 0.0
  %496 = vmatpush1.msra.mxu0 0.0
  %497 = vmatprep.subr.mxu0 0.0
  %498 = vmatpush1.msra.mxu0 0.0
  %499 = vmatprep.subr.mxu0 0.0
  %500 = vmatpush1.msra.mxu0 0.0
  %501 = vmatprep.subr.mxu0 0.0
  %502 = vmatpush1.msra.mxu0 0.0
  %503 = vmatprep.subr.mxu0 0.0
  %504 = vmatpush1.msra.mxu0 0.0
  %505 = vmatprep.subr.mxu0 0.0
  %506 = vmatpush1.msra.mxu0 0.0
  %507 = vmatprep.subr.mxu0 0.0
  %508 = vmatpush1.msra.mxu0 0.0
  %509 = vmatprep.subr.mxu0 0.0
  %510 = vmatpush1.msra.mxu0 0.0
  %511 = vmatprep.subr.mxu0 0.0
  %512 = vmatpush1.msra.mxu0 0.0
  %513 = vmatprep.subr.mxu0 0.0
  %514 = vmatpush1.msra.mxu0 0.0
  %515 = vmatprep.subr.mxu0 0.0
  %516 = vmatpush1.msra.mxu0 0.0
  %517 = vmatprep.subr.mxu0 0.0
  %518 = vmatpush1.msra.mxu0 0.0
  %519 = vmatprep.subr.mxu0 0.0
  %520 = vmatpush1.msra.mxu0 0.0
  %521 = vmatprep.subr.mxu0 0.0
  %522 = vmatpush1.msra.mxu0 0.0
  %523 = vmatprep.subr.mxu0 0.0
  %524 = vmatpush1.msra.mxu0 0.0
  %525 = vmatprep.subr.mxu0 0.0
  %526 = vmatpush1.msra.mxu0 0.0
  %527 = vmatprep.subr.mxu0 0.0
  %528 = vmatpush1.msra.mxu0 0.0
  %529 = vmatprep.subr.mxu0 0.0
  %530 = vmatpush1.msra.mxu0 0.0
  %531 = vmatprep.subr.mxu0 0.0
  %532 = vmatpush1.msra.mxu0 0.0
  %533 = vmatprep.subr.mxu0 0.0
  %534 = vmatpush1.msra.mxu0 0.0
  %535 = vmatprep.subr.mxu0 0.0
  %536 = vmatpush1.msra.mxu0 0.0
  %537 = vmatprep.subr.mxu0 0.0
  %538 = vmatpush1.msra.mxu0 0.0
  %539 = vmatprep.subr.mxu0 0.0
  %540 = vmatpush1.msra.mxu0 0.0
  %541 = vmatprep.subr.mxu0 0.0
  %542 = vmatpush1.msra.mxu0 0.0
  %543 = vmatprep.subr.mxu0 0.0
  %544 = vmatpush1.msra.mxu0 0.0
  %545 = vmatprep.subr.mxu0 0.0
  %546 = vmatpush1.msra.mxu0 0.0
  %547 = vmatprep.subr.mxu0 0.0
  %548 = vmatpush1.msra.mxu0 0.0
  %549 = vmatprep.subr.mxu0 0.0
  %550 = vmatpush1.msra.mxu0 0.0
  %551 = vmatprep.subr.mxu0 0.0
  %552 = vmatpush1.msra.mxu0 0.0
  %553 = vmatprep.mubr.f32.mxu0 0.0
  %554 = vmatmul.mubr.f32.gmra.mrb[0].mxu0 %v466
  %v555 = vpop.f32.mrb[0].mxu0
  %v556 = vadd.f32 0.0, %v555
  %v557 = vpop.f32.mrb[0].mxu0
  %558 = vmatprep.mubr.f32.mxu0 0.0
  %559 = vmatmul.mubr.f32.gmra.mrb[0].mxu0 %v469
  %v560 = vpop.f32.mrb[0].mxu0
  %v561 = vadd.f32 0.0, %v560
  %v562 = vpop.f32.mrb[0].mxu0
  %563 = vmatprep.mubr.f32.mxu0 0.0
  %564 = vmatmul.mubr.f32.gmra.mrb[0].mxu0 %v472
  %v565 = vpop.f32.mrb[0].mxu0
  %v566 = vadd.f32 0.0, %v565
  %v567 = vpop.f32.mrb[0].mxu0
  %568 = vmatprep.mubr.f32.mxu0 0.0
  %569 = vmatmul.mubr.f32.gmra.mrb[0].mxu0 %v475
  %v570 = vpop.f32.mrb[0].mxu0
  %v571 = vadd.f32 0.0, %v570
  %v572 = vpop.f32.mrb[0].mxu0
  %573 = vmatprep.mubr.f32.mxu0 0.0
  %574 = vmatmul.mubr.f32.gmra.mrb[0].mxu0 %v478
  %v575 = vpop.f32.mrb[0].mxu0
  %v576 = vadd.f32 0.0, %v575
  %v577 = vpop.f32.mrb[0].mxu0
  %578 = vmatprep.mubr.f32.mxu0 0.0
  %579 = vmatmul.mubr.f32.gmra.mrb[0].mxu0 %v481
  %v580 = vpop.f32.mrb[0].mxu0
  %v581 = vadd.f32 0.0, %v580
  %v582 = vpop.f32.mrb[0].mxu0
  %583 = vmatprep.mubr.f32.mxu0 0.0
  %584 = vmatmul.mubr.f32.gmra.mrb[0].mxu0 %v484
  %v585 = vpop.f32.mrb[0].mxu0
  %v586 = vadd.f32 0.0, %v585
  %v587 = vpop.f32.mrb[0].mxu0
  %588 = vmatprep.mubr.f32.mxu0 0.0
  %589 = vmatmul.mubr.f32.gmra.mrb[0].mxu0 %v487
  %v590 = vpop.f32.mrb[0].mxu0
  %v591 = vadd.f32 0.0, %v590
  %v592 = vpop.f32.mrb[0].mxu0
  %593 = vdwg.mxu0
  %v594 = vadd.f32 %v444, %v556
  %v595 = vadd.f32 %v445, %v561
  %v596 = vadd.f32 %v446, %v566
  %v597 = vadd.f32 %v447, %v571
  %v598 = vadd.f32 %v448, %v576
  %v599 = vadd.f32 %v449, %v581
  %v600 = vadd.f32 %v450, %v586
  %v601 = vadd.f32 %v451, %v591
  %602 = vst [vmem:[%s3] sm:$0xff] %v594
  %603 = vst [vmem:[%s3 + $0x8] sm:$0xff] %v595
  %604 = vst [vmem:[%s3 + $0x10] sm:$0xff] %v596
  %605 = vst [vmem:[%s3 + $0x18] sm:$0xff] %v597
  %606 = vst [vmem:[%s3 + $0x20] sm:$0xff] %v598
  %607 = vst [vmem:[%s3 + $0x28] sm:$0xff] %v599
  %608 = vst [vmem:[%s3 + $0x30] sm:$0xff] %v600
  %609 = vst [vmem:[%s3 + $0x38] sm:$0xff] %v601
  %v610 = vmul.f32 %v594, %v594
  %v611 = vmul.f32 %v595, %v595
  %v612 = vmul.f32 %v596, %v596
  %v613 = vmul.f32 %v597, %v597
  %v614 = vmul.f32 %v598, %v598
  %v615 = vmul.f32 %v599, %v599
  %v616 = vmul.f32 %v600, %v600
  %v617 = vmul.f32 %v601, %v601
  %vm618 = vcmask 523264
  %v620 = vsel %vm618, %v18, 0
  %622 = vmatprep.subr.mxu0 0.0
  %623 = vmatpush1.msra.mxu0 %v610
  %624 = vmatprep.subr.mxu0 0.0
  %625 = vmatpush1.msra.mxu0 %v611
  %626 = vmatprep.subr.mxu0 0.0
  %627 = vmatpush1.msra.mxu0 %v612
  %628 = vmatprep.subr.mxu0 0.0
  %629 = vmatpush1.msra.mxu0 %v613
  %630 = vmatprep.subr.mxu0 0.0
  %631 = vmatpush1.msra.mxu0 %v614
  %632 = vmatprep.subr.mxu0 0.0
  %633 = vmatpush1.msra.mxu0 %v615
  %634 = vmatprep.subr.mxu0 0.0
  %635 = vmatpush1.msra.mxu0 %v616
  %636 = vmatprep.subr.mxu0 0.0
  %637 = vmatpush1.msra.mxu0 %v617
  %638 = vmatprep.subr.mxu0 0.0
  %639 = vmatpush1.msra.mxu0 0.0
  %640 = vmatprep.subr.mxu0 0.0
  %641 = vmatpush1.msra.mxu0 0.0
  %642 = vmatprep.subr.mxu0 0.0
  %643 = vmatpush1.msra.mxu0 0.0
  %644 = vmatprep.subr.mxu0 0.0
  %645 = vmatpush1.msra.mxu0 0.0
  %646 = vmatprep.subr.mxu0 0.0
  %647 = vmatpush1.msra.mxu0 0.0
  %648 = vmatprep.subr.mxu0 0.0
  %649 = vmatpush1.msra.mxu0 0.0
  %650 = vmatprep.subr.mxu0 0.0
  %651 = vmatpush1.msra.mxu0 0.0
  %652 = vmatprep.subr.mxu0 0.0
  %653 = vmatpush1.msra.mxu0 0.0
  %654 = vmatprep.subr.mxu0 0.0
  %655 = vmatpush1.msra.mxu0 0.0
  %656 = vmatprep.subr.mxu0 0.0
  %657 = vmatpush1.msra.mxu0 0.0
  %658 = vmatprep.subr.mxu0 0.0
  %659 = vmatpush1.msra.mxu0 0.0
  %660 = vmatprep.subr.mxu0 0.0
  %661 = vmatpush1.msra.mxu0 0.0
  %662 = vmatprep.subr.mxu0 0.0
  %663 = vmatpush1.msra.mxu0 0.0
  %664 = vmatprep.subr.mxu0 0.0
  %665 = vmatpush1.msra.mxu0 0.0
  %666 = vmatprep.subr.mxu0 0.0
  %667 = vmatpush1.msra.mxu0 0.0
  %668 = vmatprep.subr.mxu0 0.0
  %669 = vmatpush1.msra.mxu0 0.0
  %670 = vmatprep.subr.mxu0 0.0
  %671 = vmatpush1.msra.mxu0 0.0
  %672 = vmatprep.subr.mxu0 0.0
  %673 = vmatpush1.msra.mxu0 0.0
  %674 = vmatprep.subr.mxu0 0.0
  %675 = vmatpush1.msra.mxu0 0.0
  %676 = vmatprep.subr.mxu0 0.0
  %677 = vmatpush1.msra.mxu0 0.0
  %678 = vmatprep.subr.mxu0 0.0
  %679 = vmatpush1.msra.mxu0 0.0
  %680 = vmatprep.subr.mxu0 0.0
  %681 = vmatpush1.msra.mxu0 0.0
  %682 = vmatprep.subr.mxu0 0.0
  %683 = vmatpush1.msra.mxu0 0.0
  %684 = vmatprep.subr.mxu0 0.0
  %685 = vmatpush1.msra.mxu0 0.0
  %686 = vmatprep.mubr.f32.mxu0 0.0
  %687 = vmatmul.mubr.f32.gmra.mrb[0].mxu0 %v620
  %v688 = vpop.f32.mrb[0].mxu0
  %v689 = vadd.f32 0.0, %v688
  %v690 = vpop.f32.mrb[0].mxu0
  %691 = vdwg.mxu0
  %v693 = vsel %vm618, %v17, 0
  %695 = vmatprep.subr.mxu0 0.0
  %696 = vmatpush1.msra.mxu0 %v594
  %697 = vmatprep.subr.mxu0 0.0
  %698 = vmatpush1.msra.mxu0 %v595
  %699 = vmatprep.subr.mxu0 0.0
  %700 = vmatpush1.msra.mxu0 %v596
  %701 = vmatprep.subr.mxu0 0.0
  %702 = vmatpush1.msra.mxu0 %v597
  %703 = vmatprep.subr.mxu0 0.0
  %704 = vmatpush1.msra.mxu0 %v598
  %705 = vmatprep.subr.mxu0 0.0
  %706 = vmatpush1.msra.mxu0 %v599
  %707 = vmatprep.subr.mxu0 0.0
  %708 = vmatpush1.msra.mxu0 %v600
  %709 = vmatprep.subr.mxu0 0.0
  %710 = vmatpush1.msra.mxu0 %v601
  %711 = vmatprep.subr.mxu0 0.0
  %712 = vmatpush1.msra.mxu0 0.0
  %713 = vmatprep.subr.mxu0 0.0
  %714 = vmatpush1.msra.mxu0 0.0
  %715 = vmatprep.subr.mxu0 0.0
  %716 = vmatpush1.msra.mxu0 0.0
  %717 = vmatprep.subr.mxu0 0.0
  %718 = vmatpush1.msra.mxu0 0.0
  %719 = vmatprep.subr.mxu0 0.0
  %720 = vmatpush1.msra.mxu0 0.0
  %721 = vmatprep.subr.mxu0 0.0
  %722 = vmatpush1.msra.mxu0 0.0
  %723 = vmatprep.subr.mxu0 0.0
  %724 = vmatpush1.msra.mxu0 0.0
  %725 = vmatprep.subr.mxu0 0.0
  %726 = vmatpush1.msra.mxu0 0.0
  %727 = vmatprep.subr.mxu0 0.0
  %728 = vmatpush1.msra.mxu0 0.0
  %729 = vmatprep.subr.mxu0 0.0
  %730 = vmatpush1.msra.mxu0 0.0
  %731 = vmatprep.subr.mxu0 0.0
  %732 = vmatpush1.msra.mxu0 0.0
  %733 = vmatprep.subr.mxu0 0.0
  %734 = vmatpush1.msra.mxu0 0.0
  %735 = vmatprep.subr.mxu0 0.0
  %736 = vmatpush1.msra.mxu0 0.0
  %737 = vmatprep.subr.mxu0 0.0
  %738 = vmatpush1.msra.mxu0 0.0
  %739 = vmatprep.subr.mxu0 0.0
  %740 = vmatpush1.msra.mxu0 0.0
  %741 = vmatprep.subr.mxu0 0.0
  %742 = vmatpush1.msra.mxu0 0.0
  %743 = vmatprep.subr.mxu0 0.0
  %744 = vmatpush1.msra.mxu0 0.0
  %745 = vmatprep.subr.mxu0 0.0
  %746 = vmatpush1.msra.mxu0 0.0
  %747 = vmatprep.subr.mxu0 0.0
  %748 = vmatpush1.msra.mxu0 0.0
  %749 = vmatprep.subr.mxu0 0.0
  %750 = vmatpush1.msra.mxu0 0.0
  %751 = vmatprep.subr.mxu0 0.0
  %752 = vmatpush1.msra.mxu0 0.0
  %753 = vmatprep.subr.mxu0 0.0
  %754 = vmatpush1.msra.mxu0 0.0
  %755 = vmatprep.subr.mxu0 0.0
  %756 = vmatpush1.msra.mxu0 0.0
  %757 = vmatprep.subr.mxu0 0.0
  %758 = vmatpush1.msra.mxu0 0.0
  %759 = vmatprep.mubr.f32.mxu0 0.0
  %760 = vmatmul.mubr.f32.gmra.mrb[0].mxu0 %v693
  %v761 = vpop.f32.mrb[0].mxu0
  %v762 = vadd.f32 %v689, %v761
  %v763 = vpop.f32.mrb[0].mxu0
  %764 = vdwg.mxu0
  %765 = vst [vmem:[%s4] sm:$0xff] %v762
  %s766 = sadd.s32 %s16, 80
  %s767 = scalar_lea.vmem %s1, %s766
  %v768 = vld [vmem:[%s767] sm:$0xff]
  %v769 = vld [vmem:[%s767 + $0x8] sm:$0xff]
  %v770 = vld [vmem:[%s767 + $0x10] sm:$0xff]
  %v771 = vld [vmem:[%s767 + $0x18] sm:$0xff]
  %v772 = vld [vmem:[%s767 + $0x20] sm:$0xff]
  %v773 = vld [vmem:[%s767 + $0x28] sm:$0xff]
  %v774 = vld [vmem:[%s767 + $0x30] sm:$0xff]
  %v775 = vld [vmem:[%s767 + $0x38] sm:$0xff]
  %v776 = vld [vmem:[%s2] sm:$0xff]
  %v777 = vld [vmem:[%s2 + $0x8] sm:$0xff]
  %s778 = sadd.s32 %s30, 80
  %s779 = scalar_lea.vmem %s1, %s778
  %v780 = vld [vmem:[%s779] sm:$0xff]
  %v781 = vld [vmem:[%s779 + $0x8] sm:$0xff]
  %v782 = vld [vmem:[%s779 + $0x10] sm:$0xff]
  %v783 = vld [vmem:[%s779 + $0x18] sm:$0xff]
  %v784 = vld [vmem:[%s779 + $0x20] sm:$0xff]
  %v785 = vld [vmem:[%s779 + $0x28] sm:$0xff]
  %v786 = vld [vmem:[%s779 + $0x30] sm:$0xff]
  %v787 = vld [vmem:[%s779 + $0x38] sm:$0xff]
  %v788 = vld [vmem:[%s40] sm:$0xff]
  %v789 = vld [vmem:[%s40 + $0x8] sm:$0xff]
  %v791 = vsel %vm43, %v780, 0
  %v794 = vsel %vm43, %v781, 0
  %v797 = vsel %vm43, %v782, 0
  %v800 = vsel %vm43, %v783, 0
  %v803 = vsel %vm43, %v784, 0
  %v806 = vsel %vm43, %v785, 0
  %v809 = vsel %vm43, %v786, 0
  %v812 = vsel %vm43, %v787, 0
  %814 = vmatprep.subr.mxu0 0.0
  %815 = vmatpush1.msra.mxu0 %v788
  %816 = vmatprep.subr.mxu0 0.0
  %817 = vmatpush1.msra.mxu0 %v789
  %818 = vmatprep.subr.mxu0 0.0
  %819 = vmatpush1.msra.mxu0 0.0
  %820 = vmatprep.subr.mxu0 0.0
  %821 = vmatpush1.msra.mxu0 0.0
  %822 = vmatprep.subr.mxu0 0.0
  %823 = vmatpush1.msra.mxu0 0.0
  %824 = vmatprep.subr.mxu0 0.0
  %825 = vmatpush1.msra.mxu0 0.0
  %826 = vmatprep.subr.mxu0 0.0
  %827 = vmatpush1.msra.mxu0 0.0
  %828 = vmatprep.subr.mxu0 0.0
  %829 = vmatpush1.msra.mxu0 0.0
  %830 = vmatprep.subr.mxu0 0.0
  %831 = vmatpush1.msra.mxu0 0.0
  %832 = vmatprep.subr.mxu0 0.0
  %833 = vmatpush1.msra.mxu0 0.0
  %834 = vmatprep.subr.mxu0 0.0
  %835 = vmatpush1.msra.mxu0 0.0
  %836 = vmatprep.subr.mxu0 0.0
  %837 = vmatpush1.msra.mxu0 0.0
  %838 = vmatprep.subr.mxu0 0.0
  %839 = vmatpush1.msra.mxu0 0.0
  %840 = vmatprep.subr.mxu0 0.0
  %841 = vmatpush1.msra.mxu0 0.0
  %842 = vmatprep.subr.mxu0 0.0
  %843 = vmatpush1.msra.mxu0 0.0
  %844 = vmatprep.subr.mxu0 0.0
  %845 = vmatpush1.msra.mxu0 0.0
  %846 = vmatprep.subr.mxu0 0.0
  %847 = vmatpush1.msra.mxu0 0.0
  %848 = vmatprep.subr.mxu0 0.0
  %849 = vmatpush1.msra.mxu0 0.0
  %850 = vmatprep.subr.mxu0 0.0
  %851 = vmatpush1.msra.mxu0 0.0
  %852 = vmatprep.subr.mxu0 0.0
  %853 = vmatpush1.msra.mxu0 0.0
  %854 = vmatprep.subr.mxu0 0.0
  %855 = vmatpush1.msra.mxu0 0.0
  %856 = vmatprep.subr.mxu0 0.0
  %857 = vmatpush1.msra.mxu0 0.0
  %858 = vmatprep.subr.mxu0 0.0
  %859 = vmatpush1.msra.mxu0 0.0
  %860 = vmatprep.subr.mxu0 0.0
  %861 = vmatpush1.msra.mxu0 0.0
  %862 = vmatprep.subr.mxu0 0.0
  %863 = vmatpush1.msra.mxu0 0.0
  %864 = vmatprep.subr.mxu0 0.0
  %865 = vmatpush1.msra.mxu0 0.0
  %866 = vmatprep.subr.mxu0 0.0
  %867 = vmatpush1.msra.mxu0 0.0
  %868 = vmatprep.subr.mxu0 0.0
  %869 = vmatpush1.msra.mxu0 0.0
  %870 = vmatprep.subr.mxu0 0.0
  %871 = vmatpush1.msra.mxu0 0.0
  %872 = vmatprep.subr.mxu0 0.0
  %873 = vmatpush1.msra.mxu0 0.0
  %874 = vmatprep.subr.mxu0 0.0
  %875 = vmatpush1.msra.mxu0 0.0
  %876 = vmatprep.subr.mxu0 0.0
  %877 = vmatpush1.msra.mxu0 0.0
  %878 = vmatprep.mubr.f32.mxu0 0.0
  %879 = vmatmul.mubr.f32.gmra.mrb[0].mxu0 %v791
  %v880 = vpop.f32.mrb[0].mxu0
  %v881 = vadd.f32 0.0, %v880
  %v882 = vpop.f32.mrb[0].mxu0
  %883 = vmatprep.mubr.f32.mxu0 0.0
  %884 = vmatmul.mubr.f32.gmra.mrb[0].mxu0 %v794
  %v885 = vpop.f32.mrb[0].mxu0
  %v886 = vadd.f32 0.0, %v885
  %v887 = vpop.f32.mrb[0].mxu0
  %888 = vmatprep.mubr.f32.mxu0 0.0
  %889 = vmatmul.mubr.f32.gmra.mrb[0].mxu0 %v797
  %v890 = vpop.f32.mrb[0].mxu0
  %v891 = vadd.f32 0.0, %v890
  %v892 = vpop.f32.mrb[0].mxu0
  %893 = vmatprep.mubr.f32.mxu0 0.0
  %894 = vmatmul.mubr.f32.gmra.mrb[0].mxu0 %v800
  %v895 = vpop.f32.mrb[0].mxu0
  %v896 = vadd.f32 0.0, %v895
  %v897 = vpop.f32.mrb[0].mxu0
  %898 = vmatprep.mubr.f32.mxu0 0.0
  %899 = vmatmul.mubr.f32.gmra.mrb[0].mxu0 %v803
  %v900 = vpop.f32.mrb[0].mxu0
  %v901 = vadd.f32 0.0, %v900
  %v902 = vpop.f32.mrb[0].mxu0
  %903 = vmatprep.mubr.f32.mxu0 0.0
  %904 = vmatmul.mubr.f32.gmra.mrb[0].mxu0 %v806
  %v905 = vpop.f32.mrb[0].mxu0
  %v906 = vadd.f32 0.0, %v905
  %v907 = vpop.f32.mrb[0].mxu0
  %908 = vmatprep.mubr.f32.mxu0 0.0
  %909 = vmatmul.mubr.f32.gmra.mrb[0].mxu0 %v809
  %v910 = vpop.f32.mrb[0].mxu0
  %v911 = vadd.f32 0.0, %v910
  %v912 = vpop.f32.mrb[0].mxu0
  %913 = vmatprep.mubr.f32.mxu0 0.0
  %914 = vmatmul.mubr.f32.gmra.mrb[0].mxu0 %v812
  %v915 = vpop.f32.mrb[0].mxu0
  %v916 = vadd.f32 0.0, %v915
  %v917 = vpop.f32.mrb[0].mxu0
  %918 = vdwg.mxu0
  %v920 = vsel %vm43, %v768, 0
  %v923 = vsel %vm43, %v769, 0
  %v926 = vsel %vm43, %v770, 0
  %v929 = vsel %vm43, %v771, 0
  %v932 = vsel %vm43, %v772, 0
  %v935 = vsel %vm43, %v773, 0
  %v938 = vsel %vm43, %v774, 0
  %v941 = vsel %vm43, %v775, 0
  %943 = vmatprep.subr.mxu0 0.0
  %944 = vmatpush1.msra.mxu0 %v776
  %945 = vmatprep.subr.mxu0 0.0
  %946 = vmatpush1.msra.mxu0 %v777
  %947 = vmatprep.subr.mxu0 0.0
  %948 = vmatpush1.msra.mxu0 0.0
  %949 = vmatprep.subr.mxu0 0.0
  %950 = vmatpush1.msra.mxu0 0.0
  %951 = vmatprep.subr.mxu0 0.0
  %952 = vmatpush1.msra.mxu0 0.0
  %953 = vmatprep.subr.mxu0 0.0
  %954 = vmatpush1.msra.mxu0 0.0
  %955 = vmatprep.subr.mxu0 0.0
  %956 = vmatpush1.msra.mxu0 0.0
  %957 = vmatprep.subr.mxu0 0.0
  %958 = vmatpush1.msra.mxu0 0.0
  %959 = vmatprep.subr.mxu0 0.0
  %960 = vmatpush1.msra.mxu0 0.0
  %961 = vmatprep.subr.mxu0 0.0
  %962 = vmatpush1.msra.mxu0 0.0
  %963 = vmatprep.subr.mxu0 0.0
  %964 = vmatpush1.msra.mxu0 0.0
  %965 = vmatprep.subr.mxu0 0.0
  %966 = vmatpush1.msra.mxu0 0.0
  %967 = vmatprep.subr.mxu0 0.0
  %968 = vmatpush1.msra.mxu0 0.0
  %969 = vmatprep.subr.mxu0 0.0
  %970 = vmatpush1.msra.mxu0 0.0
  %971 = vmatprep.subr.mxu0 0.0
  %972 = vmatpush1.msra.mxu0 0.0
  %973 = vmatprep.subr.mxu0 0.0
  %974 = vmatpush1.msra.mxu0 0.0
  %975 = vmatprep.subr.mxu0 0.0
  %976 = vmatpush1.msra.mxu0 0.0
  %977 = vmatprep.subr.mxu0 0.0
  %978 = vmatpush1.msra.mxu0 0.0
  %979 = vmatprep.subr.mxu0 0.0
  %980 = vmatpush1.msra.mxu0 0.0
  %981 = vmatprep.subr.mxu0 0.0
  %982 = vmatpush1.msra.mxu0 0.0
  %983 = vmatprep.subr.mxu0 0.0
  %984 = vmatpush1.msra.mxu0 0.0
  %985 = vmatprep.subr.mxu0 0.0
  %986 = vmatpush1.msra.mxu0 0.0
  %987 = vmatprep.subr.mxu0 0.0
  %988 = vmatpush1.msra.mxu0 0.0
  %989 = vmatprep.subr.mxu0 0.0
  %990 = vmatpush1.msra.mxu0 0.0
  %991 = vmatprep.subr.mxu0 0.0
  %992 = vmatpush1.msra.mxu0 0.0
  %993 = vmatprep.subr.mxu0 0.0
  %994 = vmatpush1.msra.mxu0 0.0
  %995 = vmatprep.subr.mxu0 0.0
  %996 = vmatpush1.msra.mxu0 0.0
  %997 = vmatprep.subr.mxu0 0.0
  %998 = vmatpush1.msra.mxu0 0.0
  %999 = vmatprep.subr.mxu0 0.0
  %1000 = vmatpush1.msra.mxu0 0.0
  %1001 = vmatprep.subr.mxu0 0.0
  %1002 = vmatpush1.msra.mxu0 0.0
  %1003 = vmatprep.subr.mxu0 0.0
  %1004 = vmatpush1.msra.mxu0 0.0
  %1005 = vmatprep.subr.mxu0 0.0
  %1006 = vmatpush1.msra.mxu0 0.0
  %1007 = vmatprep.mubr.f32.mxu0 0.0
  %1008 = vmatmul.mubr.f32.gmra.mrb[0].mxu0 %v920
  %v1009 = vpop.f32.mrb[0].mxu0
  %v1010 = vadd.f32 %v881, %v1009
  %v1011 = vpop.f32.mrb[0].mxu0
  %1012 = vmatprep.mubr.f32.mxu0 0.0
  %1013 = vmatmul.mubr.f32.gmra.mrb[0].mxu0 %v923
  %v1014 = vpop.f32.mrb[0].mxu0
  %v1015 = vadd.f32 %v886, %v1014
  %v1016 = vpop.f32.mrb[0].mxu0
  %1017 = vmatprep.mubr.f32.mxu0 0.0
  %1018 = vmatmul.mubr.f32.gmra.mrb[0].mxu0 %v926
  %v1019 = vpop.f32.mrb[0].mxu0
  %v1020 = vadd.f32 %v891, %v1019
  %v1021 = vpop.f32.mrb[0].mxu0
  %1022 = vmatprep.mubr.f32.mxu0 0.0
  %1023 = vmatmul.mubr.f32.gmra.mrb[0].mxu0 %v929
  %v1024 = vpop.f32.mrb[0].mxu0
  %v1025 = vadd.f32 %v896, %v1024
  %v1026 = vpop.f32.mrb[0].mxu0
  %1027 = vmatprep.mubr.f32.mxu0 0.0
  %1028 = vmatmul.mubr.f32.gmra.mrb[0].mxu0 %v932
  %v1029 = vpop.f32.mrb[0].mxu0
  %v1030 = vadd.f32 %v901, %v1029
  %v1031 = vpop.f32.mrb[0].mxu0
  %1032 = vmatprep.mubr.f32.mxu0 0.0
  %1033 = vmatmul.mubr.f32.gmra.mrb[0].mxu0 %v935
  %v1034 = vpop.f32.mrb[0].mxu0
  %v1035 = vadd.f32 %v906, %v1034
  %v1036 = vpop.f32.mrb[0].mxu0
  %1037 = vmatprep.mubr.f32.mxu0 0.0
  %1038 = vmatmul.mubr.f32.gmra.mrb[0].mxu0 %v938
  %v1039 = vpop.f32.mrb[0].mxu0
  %v1040 = vadd.f32 %v911, %v1039
  %v1041 = vpop.f32.mrb[0].mxu0
  %1042 = vmatprep.mubr.f32.mxu0 0.0
  %1043 = vmatmul.mubr.f32.gmra.mrb[0].mxu0 %v941
  %v1044 = vpop.f32.mrb[0].mxu0
  %v1045 = vadd.f32 %v916, %v1044
  %v1046 = vpop.f32.mrb[0].mxu0
  %1047 = vdwg.mxu0
  %s1048 = sadd.s32 %s302, 80
  %s1049 = scalar_lea.vmem %s1, %s1048
  %v1050 = vld [vmem:[%s1049] sm:$0xff]
  %v1051 = vld [vmem:[%s1049 + $0x8] sm:$0xff]
  %v1052 = vld [vmem:[%s1049 + $0x10] sm:$0xff]
  %v1053 = vld [vmem:[%s1049 + $0x18] sm:$0xff]
  %v1054 = vld [vmem:[%s1049 + $0x20] sm:$0xff]
  %v1055 = vld [vmem:[%s1049 + $0x28] sm:$0xff]
  %v1056 = vld [vmem:[%s1049 + $0x30] sm:$0xff]
  %v1057 = vld [vmem:[%s1049 + $0x38] sm:$0xff]
  %v1058 = vld [vmem:[%s312] sm:$0xff]
  %v1059 = vld [vmem:[%s312 + $0x8] sm:$0xff]
  %v1061 = vsel %vm43, %v1050, 0
  %v1064 = vsel %vm43, %v1051, 0
  %v1067 = vsel %vm43, %v1052, 0
  %v1070 = vsel %vm43, %v1053, 0
  %v1073 = vsel %vm43, %v1054, 0
  %v1076 = vsel %vm43, %v1055, 0
  %v1079 = vsel %vm43, %v1056, 0
  %v1082 = vsel %vm43, %v1057, 0
  %1084 = vmatprep.subr.mxu0 0.0
  %1085 = vmatpush1.msra.mxu0 %v1058
  %1086 = vmatprep.subr.mxu0 0.0
  %1087 = vmatpush1.msra.mxu0 %v1059
  %1088 = vmatprep.subr.mxu0 0.0
  %1089 = vmatpush1.msra.mxu0 0.0
  %1090 = vmatprep.subr.mxu0 0.0
  %1091 = vmatpush1.msra.mxu0 0.0
  %1092 = vmatprep.subr.mxu0 0.0
  %1093 = vmatpush1.msra.mxu0 0.0
  %1094 = vmatprep.subr.mxu0 0.0
  %1095 = vmatpush1.msra.mxu0 0.0
  %1096 = vmatprep.subr.mxu0 0.0
  %1097 = vmatpush1.msra.mxu0 0.0
  %1098 = vmatprep.subr.mxu0 0.0
  %1099 = vmatpush1.msra.mxu0 0.0
  %1100 = vmatprep.subr.mxu0 0.0
  %1101 = vmatpush1.msra.mxu0 0.0
  %1102 = vmatprep.subr.mxu0 0.0
  %1103 = vmatpush1.msra.mxu0 0.0
  %1104 = vmatprep.subr.mxu0 0.0
  %1105 = vmatpush1.msra.mxu0 0.0
  %1106 = vmatprep.subr.mxu0 0.0
  %1107 = vmatpush1.msra.mxu0 0.0
  %1108 = vmatprep.subr.mxu0 0.0
  %1109 = vmatpush1.msra.mxu0 0.0
  %1110 = vmatprep.subr.mxu0 0.0
  %1111 = vmatpush1.msra.mxu0 0.0
  %1112 = vmatprep.subr.mxu0 0.0
  %1113 = vmatpush1.msra.mxu0 0.0
  %1114 = vmatprep.subr.mxu0 0.0
  %1115 = vmatpush1.msra.mxu0 0.0
  %1116 = vmatprep.subr.mxu0 0.0
  %1117 = vmatpush1.msra.mxu0 0.0
  %1118 = vmatprep.subr.mxu0 0.0
  %1119 = vmatpush1.msra.mxu0 0.0
  %1120 = vmatprep.subr.mxu0 0.0
  %1121 = vmatpush1.msra.mxu0 0.0
  %1122 = vmatprep.subr.mxu0 0.0
  %1123 = vmatpush1.msra.mxu0 0.0
  %1124 = vmatprep.subr.mxu0 0.0
  %1125 = vmatpush1.msra.mxu0 0.0
  %1126 = vmatprep.subr.mxu0 0.0
  %1127 = vmatpush1.msra.mxu0 0.0
  %1128 = vmatprep.subr.mxu0 0.0
  %1129 = vmatpush1.msra.mxu0 0.0
  %1130 = vmatprep.subr.mxu0 0.0
  %1131 = vmatpush1.msra.mxu0 0.0
  %1132 = vmatprep.subr.mxu0 0.0
  %1133 = vmatpush1.msra.mxu0 0.0
  %1134 = vmatprep.subr.mxu0 0.0
  %1135 = vmatpush1.msra.mxu0 0.0
  %1136 = vmatprep.subr.mxu0 0.0
  %1137 = vmatpush1.msra.mxu0 0.0
  %1138 = vmatprep.subr.mxu0 0.0
  %1139 = vmatpush1.msra.mxu0 0.0
  %1140 = vmatprep.subr.mxu0 0.0
  %1141 = vmatpush1.msra.mxu0 0.0
  %1142 = vmatprep.subr.mxu0 0.0
  %1143 = vmatpush1.msra.mxu0 0.0
  %1144 = vmatprep.subr.mxu0 0.0
  %1145 = vmatpush1.msra.mxu0 0.0
  %1146 = vmatprep.subr.mxu0 0.0
  %1147 = vmatpush1.msra.mxu0 0.0
  %1148 = vmatprep.mubr.f32.mxu0 0.0
  %1149 = vmatmul.mubr.f32.gmra.mrb[0].mxu0 %v1061
  %v1150 = vpop.f32.mrb[0].mxu0
  %v1151 = vadd.f32 0.0, %v1150
  %v1152 = vpop.f32.mrb[0].mxu0
  %1153 = vmatprep.mubr.f32.mxu0 0.0
  %1154 = vmatmul.mubr.f32.gmra.mrb[0].mxu0 %v1064
  %v1155 = vpop.f32.mrb[0].mxu0
  %v1156 = vadd.f32 0.0, %v1155
  %v1157 = vpop.f32.mrb[0].mxu0
  %1158 = vmatprep.mubr.f32.mxu0 0.0
  %1159 = vmatmul.mubr.f32.gmra.mrb[0].mxu0 %v1067
  %v1160 = vpop.f32.mrb[0].mxu0
  %v1161 = vadd.f32 0.0, %v1160
  %v1162 = vpop.f32.mrb[0].mxu0
  %1163 = vmatprep.mubr.f32.mxu0 0.0
  %1164 = vmatmul.mubr.f32.gmra.mrb[0].mxu0 %v1070
  %v1165 = vpop.f32.mrb[0].mxu0
  %v1166 = vadd.f32 0.0, %v1165
  %v1167 = vpop.f32.mrb[0].mxu0
  %1168 = vmatprep.mubr.f32.mxu0 0.0
  %1169 = vmatmul.mubr.f32.gmra.mrb[0].mxu0 %v1073
  %v1170 = vpop.f32.mrb[0].mxu0
  %v1171 = vadd.f32 0.0, %v1170
  %v1172 = vpop.f32.mrb[0].mxu0
  %1173 = vmatprep.mubr.f32.mxu0 0.0
  %1174 = vmatmul.mubr.f32.gmra.mrb[0].mxu0 %v1076
  %v1175 = vpop.f32.mrb[0].mxu0
  %v1176 = vadd.f32 0.0, %v1175
  %v1177 = vpop.f32.mrb[0].mxu0
  %1178 = vmatprep.mubr.f32.mxu0 0.0
  %1179 = vmatmul.mubr.f32.gmra.mrb[0].mxu0 %v1079
  %v1180 = vpop.f32.mrb[0].mxu0
  %v1181 = vadd.f32 0.0, %v1180
  %v1182 = vpop.f32.mrb[0].mxu0
  %1183 = vmatprep.mubr.f32.mxu0 0.0
  %1184 = vmatmul.mubr.f32.gmra.mrb[0].mxu0 %v1082
  %v1185 = vpop.f32.mrb[0].mxu0
  %v1186 = vadd.f32 0.0, %v1185
  %v1187 = vpop.f32.mrb[0].mxu0
  %1188 = vdwg.mxu0
  %v1189 = vadd.f32 %v1010, %v1151
  %v1190 = vadd.f32 %v1015, %v1156
  %v1191 = vadd.f32 %v1020, %v1161
  %v1192 = vadd.f32 %v1025, %v1166
  %v1193 = vadd.f32 %v1030, %v1171
  %v1194 = vadd.f32 %v1035, %v1176
  %v1195 = vadd.f32 %v1040, %v1181
  %v1196 = vadd.f32 %v1045, %v1186
  %s1197 = sadd.s32 %s452, 80
  %s1198 = scalar_lea.vmem %s1, %s1197
  %v1199 = vld [vmem:[%s1198] sm:$0xff]
  %v1200 = vld [vmem:[%s1198 + $0x8] sm:$0xff]
  %v1201 = vld [vmem:[%s1198 + $0x10] sm:$0xff]
  %v1202 = vld [vmem:[%s1198 + $0x18] sm:$0xff]
  %v1203 = vld [vmem:[%s1198 + $0x20] sm:$0xff]
  %v1204 = vld [vmem:[%s1198 + $0x28] sm:$0xff]
  %v1205 = vld [vmem:[%s1198 + $0x30] sm:$0xff]
  %v1206 = vld [vmem:[%s1198 + $0x38] sm:$0xff]
  %v1207 = vld [vmem:[%s462] sm:$0xff]
  %v1208 = vld [vmem:[%s462 + $0x8] sm:$0xff]
  %v1210 = vsel %vm43, %v1199, 0
  %v1213 = vsel %vm43, %v1200, 0
  %v1216 = vsel %vm43, %v1201, 0
  %v1219 = vsel %vm43, %v1202, 0
  %v1222 = vsel %vm43, %v1203, 0
  %v1225 = vsel %vm43, %v1204, 0
  %v1228 = vsel %vm43, %v1205, 0
  %v1231 = vsel %vm43, %v1206, 0
  %1233 = vmatprep.subr.mxu0 0.0
  %1234 = vmatpush1.msra.mxu0 %v1207
  %1235 = vmatprep.subr.mxu0 0.0
  %1236 = vmatpush1.msra.mxu0 %v1208
  %1237 = vmatprep.subr.mxu0 0.0
  %1238 = vmatpush1.msra.mxu0 0.0
  %1239 = vmatprep.subr.mxu0 0.0
  %1240 = vmatpush1.msra.mxu0 0.0
  %1241 = vmatprep.subr.mxu0 0.0
  %1242 = vmatpush1.msra.mxu0 0.0
  %1243 = vmatprep.subr.mxu0 0.0
  %1244 = vmatpush1.msra.mxu0 0.0
  %1245 = vmatprep.subr.mxu0 0.0
  %1246 = vmatpush1.msra.mxu0 0.0
  %1247 = vmatprep.subr.mxu0 0.0
  %1248 = vmatpush1.msra.mxu0 0.0
  %1249 = vmatprep.subr.mxu0 0.0
  %1250 = vmatpush1.msra.mxu0 0.0
  %1251 = vmatprep.subr.mxu0 0.0
  %1252 = vmatpush1.msra.mxu0 0.0
  %1253 = vmatprep.subr.mxu0 0.0
  %1254 = vmatpush1.msra.mxu0 0.0
  %1255 = vmatprep.subr.mxu0 0.0
  %1256 = vmatpush1.msra.mxu0 0.0
  %1257 = vmatprep.subr.mxu0 0.0
  %1258 = vmatpush1.msra.mxu0 0.0
  %1259 = vmatprep.subr.mxu0 0.0
  %1260 = vmatpush1.msra.mxu0 0.0
  %1261 = vmatprep.subr.mxu0 0.0
  %1262 = vmatpush1.msra.mxu0 0.0
  %1263 = vmatprep.subr.mxu0 0.0
  %1264 = vmatpush1.msra.mxu0 0.0
  %1265 = vmatprep.subr.mxu0 0.0
  %1266 = vmatpush1.msra.mxu0 0.0
  %1267 = vmatprep.subr.mxu0 0.0
  %1268 = vmatpush1.msra.mxu0 0.0
  %1269 = vmatprep.subr.mxu0 0.0
  %1270 = vmatpush1.msra.mxu0 0.0
  %1271 = vmatprep.subr.mxu0 0.0
  %1272 = vmatpush1.msra.mxu0 0.0
  %1273 = vmatprep.subr.mxu0 0.0
  %1274 = vmatpush1.msra.mxu0 0.0
  %1275 = vmatprep.subr.mxu0 0.0
  %1276 = vmatpush1.msra.mxu0 0.0
  %1277 = vmatprep.subr.mxu0 0.0
  %1278 = vmatpush1.msra.mxu0 0.0
  %1279 = vmatprep.subr.mxu0 0.0
  %1280 = vmatpush1.msra.mxu0 0.0
  %1281 = vmatprep.subr.mxu0 0.0
  %1282 = vmatpush1.msra.mxu0 0.0
  %1283 = vmatprep.subr.mxu0 0.0
  %1284 = vmatpush1.msra.mxu0 0.0
  %1285 = vmatprep.subr.mxu0 0.0
  %1286 = vmatpush1.msra.mxu0 0.0
  %1287 = vmatprep.subr.mxu0 0.0
  %1288 = vmatpush1.msra.mxu0 0.0
  %1289 = vmatprep.subr.mxu0 0.0
  %1290 = vmatpush1.msra.mxu0 0.0
  %1291 = vmatprep.subr.mxu0 0.0
  %1292 = vmatpush1.msra.mxu0 0.0
  %1293 = vmatprep.subr.mxu0 0.0
  %1294 = vmatpush1.msra.mxu0 0.0
  %1295 = vmatprep.subr.mxu0 0.0
  %1296 = vmatpush1.msra.mxu0 0.0
  %1297 = vmatprep.mubr.f32.mxu0 0.0
  %1298 = vmatmul.mubr.f32.gmra.mrb[0].mxu0 %v1210
  %v1299 = vpop.f32.mrb[0].mxu0
  %v1300 = vadd.f32 0.0, %v1299
  %v1301 = vpop.f32.mrb[0].mxu0
  %1302 = vmatprep.mubr.f32.mxu0 0.0
  %1303 = vmatmul.mubr.f32.gmra.mrb[0].mxu0 %v1213
  %v1304 = vpop.f32.mrb[0].mxu0
  %v1305 = vadd.f32 0.0, %v1304
  %v1306 = vpop.f32.mrb[0].mxu0
  %1307 = vmatprep.mubr.f32.mxu0 0.0
  %1308 = vmatmul.mubr.f32.gmra.mrb[0].mxu0 %v1216
  %v1309 = vpop.f32.mrb[0].mxu0
  %v1310 = vadd.f32 0.0, %v1309
  %v1311 = vpop.f32.mrb[0].mxu0
  %1312 = vmatprep.mubr.f32.mxu0 0.0
  %1313 = vmatmul.mubr.f32.gmra.mrb[0].mxu0 %v1219
  %v1314 = vpop.f32.mrb[0].mxu0
  %v1315 = vadd.f32 0.0, %v1314
  %v1316 = vpop.f32.mrb[0].mxu0
  %1317 = vmatprep.mubr.f32.mxu0 0.0
  %1318 = vmatmul.mubr.f32.gmra.mrb[0].mxu0 %v1222
  %v1319 = vpop.f32.mrb[0].mxu0
  %v1320 = vadd.f32 0.0, %v1319
  %v1321 = vpop.f32.mrb[0].mxu0
  %1322 = vmatprep.mubr.f32.mxu0 0.0
  %1323 = vmatmul.mubr.f32.gmra.mrb[0].mxu0 %v1225
  %v1324 = vpop.f32.mrb[0].mxu0
  %v1325 = vadd.f32 0.0, %v1324
  %v1326 = vpop.f32.mrb[0].mxu0
  %1327 = vmatprep.mubr.f32.mxu0 0.0
  %1328 = vmatmul.mubr.f32.gmra.mrb[0].mxu0 %v1228
  %v1329 = vpop.f32.mrb[0].mxu0
  %v1330 = vadd.f32 0.0, %v1329
  %v1331 = vpop.f32.mrb[0].mxu0
  %1332 = vmatprep.mubr.f32.mxu0 0.0
  %1333 = vmatmul.mubr.f32.gmra.mrb[0].mxu0 %v1231
  %v1334 = vpop.f32.mrb[0].mxu0
  %v1335 = vadd.f32 0.0, %v1334
  %v1336 = vpop.f32.mrb[0].mxu0
  %1337 = vdwg.mxu0
  %v1338 = vadd.f32 %v1189, %v1300
  %v1339 = vadd.f32 %v1190, %v1305
  %v1340 = vadd.f32 %v1191, %v1310
  %v1341 = vadd.f32 %v1192, %v1315
  %v1342 = vadd.f32 %v1193, %v1320
  %v1343 = vadd.f32 %v1194, %v1325
  %v1344 = vadd.f32 %v1195, %v1330
  %v1345 = vadd.f32 %v1196, %v1335
  %s1346 = scalar_lea.vmem %s3, 64
  %1347 = vst [vmem:[%s1346] sm:$0xff] %v1338
  %1348 = vst [vmem:[%s1346 + $0x8] sm:$0xff] %v1339
  %1349 = vst [vmem:[%s1346 + $0x10] sm:$0xff] %v1340
  %1350 = vst [vmem:[%s1346 + $0x18] sm:$0xff] %v1341
  %1351 = vst [vmem:[%s1346 + $0x20] sm:$0xff] %v1342
  %1352 = vst [vmem:[%s1346 + $0x28] sm:$0xff] %v1343
  %1353 = vst [vmem:[%s1346 + $0x30] sm:$0xff] %v1344
  %1354 = vst [vmem:[%s1346 + $0x38] sm:$0xff] %v1345
  %v1355 = vmul.f32 %v1338, %v1338
  %v1356 = vmul.f32 %v1339, %v1339
  %v1357 = vmul.f32 %v1340, %v1340
  %v1358 = vmul.f32 %v1341, %v1341
  %v1359 = vmul.f32 %v1342, %v1342
  %v1360 = vmul.f32 %v1343, %v1343
  %v1361 = vmul.f32 %v1344, %v1344
  %v1362 = vmul.f32 %v1345, %v1345
  %1363 = vmatprep.subr.mxu0 0.0
  %1364 = vmatpush1.msra.mxu0 %v1355
  %1365 = vmatprep.subr.mxu0 0.0
  %1366 = vmatpush1.msra.mxu0 %v1356
  %1367 = vmatprep.subr.mxu0 0.0
  %1368 = vmatpush1.msra.mxu0 %v1357
  %1369 = vmatprep.subr.mxu0 0.0
  %1370 = vmatpush1.msra.mxu0 %v1358
  %1371 = vmatprep.subr.mxu0 0.0
  %1372 = vmatpush1.msra.mxu0 %v1359
  %1373 = vmatprep.subr.mxu0 0.0
  %1374 = vmatpush1.msra.mxu0 %v1360
  %1375 = vmatprep.subr.mxu0 0.0
  %1376 = vmatpush1.msra.mxu0 %v1361
  %1377 = vmatprep.subr.mxu0 0.0
  %1378 = vmatpush1.msra.mxu0 %v1362
  %1379 = vmatprep.subr.mxu0 0.0
  %1380 = vmatpush1.msra.mxu0 0.0
  %1381 = vmatprep.subr.mxu0 0.0
  %1382 = vmatpush1.msra.mxu0 0.0
  %1383 = vmatprep.subr.mxu0 0.0
  %1384 = vmatpush1.msra.mxu0 0.0
  %1385 = vmatprep.subr.mxu0 0.0
  %1386 = vmatpush1.msra.mxu0 0.0
  %1387 = vmatprep.subr.mxu0 0.0
  %1388 = vmatpush1.msra.mxu0 0.0
  %1389 = vmatprep.subr.mxu0 0.0
  %1390 = vmatpush1.msra.mxu0 0.0
  %1391 = vmatprep.subr.mxu0 0.0
  %1392 = vmatpush1.msra.mxu0 0.0
  %1393 = vmatprep.subr.mxu0 0.0
  %1394 = vmatpush1.msra.mxu0 0.0
  %1395 = vmatprep.subr.mxu0 0.0
  %1396 = vmatpush1.msra.mxu0 0.0
  %1397 = vmatprep.subr.mxu0 0.0
  %1398 = vmatpush1.msra.mxu0 0.0
  %1399 = vmatprep.subr.mxu0 0.0
  %1400 = vmatpush1.msra.mxu0 0.0
  %1401 = vmatprep.subr.mxu0 0.0
  %1402 = vmatpush1.msra.mxu0 0.0
  %1403 = vmatprep.subr.mxu0 0.0
  %1404 = vmatpush1.msra.mxu0 0.0
  %1405 = vmatprep.subr.mxu0 0.0
  %1406 = vmatpush1.msra.mxu0 0.0
  %1407 = vmatprep.subr.mxu0 0.0
  %1408 = vmatpush1.msra.mxu0 0.0
  %1409 = vmatprep.subr.mxu0 0.0
  %1410 = vmatpush1.msra.mxu0 0.0
  %1411 = vmatprep.subr.mxu0 0.0
  %1412 = vmatpush1.msra.mxu0 0.0
  %1413 = vmatprep.subr.mxu0 0.0
  %1414 = vmatpush1.msra.mxu0 0.0
  %1415 = vmatprep.subr.mxu0 0.0
  %1416 = vmatpush1.msra.mxu0 0.0
  %1417 = vmatprep.subr.mxu0 0.0
  %1418 = vmatpush1.msra.mxu0 0.0
  %1419 = vmatprep.subr.mxu0 0.0
  %1420 = vmatpush1.msra.mxu0 0.0
  %1421 = vmatprep.subr.mxu0 0.0
  %1422 = vmatpush1.msra.mxu0 0.0
  %1423 = vmatprep.subr.mxu0 0.0
  %1424 = vmatpush1.msra.mxu0 0.0
  %1425 = vmatprep.subr.mxu0 0.0
  %1426 = vmatpush1.msra.mxu0 0.0
  %1427 = vmatprep.mubr.f32.mxu0 0.0
  %1428 = vmatmul.mubr.f32.gmra.mrb[0].mxu0 %v620
  %v1429 = vpop.f32.mrb[0].mxu0
  %v1430 = vadd.f32 0.0, %v1429
  %v1431 = vpop.f32.mrb[0].mxu0
  %1432 = vdwg.mxu0
  %1433 = vmatprep.subr.mxu0 0.0
  %1434 = vmatpush1.msra.mxu0 %v1338
  %1435 = vmatprep.subr.mxu0 0.0
  %1436 = vmatpush1.msra.mxu0 %v1339
  %1437 = vmatprep.subr.mxu0 0.0
  %1438 = vmatpush1.msra.mxu0 %v1340
  %1439 = vmatprep.subr.mxu0 0.0
  %1440 = vmatpush1.msra.mxu0 %v1341
  %1441 = vmatprep.subr.mxu0 0.0
  %1442 = vmatpush1.msra.mxu0 %v1342
  %1443 = vmatprep.subr.mxu0 0.0
  %1444 = vmatpush1.msra.mxu0 %v1343
  %1445 = vmatprep.subr.mxu0 0.0
  %1446 = vmatpush1.msra.mxu0 %v1344
  %1447 = vmatprep.subr.mxu0 0.0
  %1448 = vmatpush1.msra.mxu0 %v1345
  %1449 = vmatprep.subr.mxu0 0.0
  %1450 = vmatpush1.msra.mxu0 0.0
  %1451 = vmatprep.subr.mxu0 0.0
  %1452 = vmatpush1.msra.mxu0 0.0
  %1453 = vmatprep.subr.mxu0 0.0
  %1454 = vmatpush1.msra.mxu0 0.0
  %1455 = vmatprep.subr.mxu0 0.0
  %1456 = vmatpush1.msra.mxu0 0.0
  %1457 = vmatprep.subr.mxu0 0.0
  %1458 = vmatpush1.msra.mxu0 0.0
  %1459 = vmatprep.subr.mxu0 0.0
  %1460 = vmatpush1.msra.mxu0 0.0
  %1461 = vmatprep.subr.mxu0 0.0
  %1462 = vmatpush1.msra.mxu0 0.0
  %1463 = vmatprep.subr.mxu0 0.0
  %1464 = vmatpush1.msra.mxu0 0.0
  %1465 = vmatprep.subr.mxu0 0.0
  %1466 = vmatpush1.msra.mxu0 0.0
  %1467 = vmatprep.subr.mxu0 0.0
  %1468 = vmatpush1.msra.mxu0 0.0
  %1469 = vmatprep.subr.mxu0 0.0
  %1470 = vmatpush1.msra.mxu0 0.0
  %1471 = vmatprep.subr.mxu0 0.0
  %1472 = vmatpush1.msra.mxu0 0.0
  %1473 = vmatprep.subr.mxu0 0.0
  %1474 = vmatpush1.msra.mxu0 0.0
  %1475 = vmatprep.subr.mxu0 0.0
  %1476 = vmatpush1.msra.mxu0 0.0
  %1477 = vmatprep.subr.mxu0 0.0
  %1478 = vmatpush1.msra.mxu0 0.0
  %1479 = vmatprep.subr.mxu0 0.0
  %1480 = vmatpush1.msra.mxu0 0.0
  %1481 = vmatprep.subr.mxu0 0.0
  %1482 = vmatpush1.msra.mxu0 0.0
  %1483 = vmatprep.subr.mxu0 0.0
  %1484 = vmatpush1.msra.mxu0 0.0
  %1485 = vmatprep.subr.mxu0 0.0
  %1486 = vmatpush1.msra.mxu0 0.0
  %1487 = vmatprep.subr.mxu0 0.0
  %1488 = vmatpush1.msra.mxu0 0.0
  %1489 = vmatprep.subr.mxu0 0.0
  %1490 = vmatpush1.msra.mxu0 0.0
  %1491 = vmatprep.subr.mxu0 0.0
  %1492 = vmatpush1.msra.mxu0 0.0
  %1493 = vmatprep.subr.mxu0 0.0
  %1494 = vmatpush1.msra.mxu0 0.0
  %1495 = vmatprep.subr.mxu0 0.0
  %1496 = vmatpush1.msra.mxu0 0.0
  %1497 = vmatprep.mubr.f32.mxu0 0.0
  %1498 = vmatmul.mubr.f32.gmra.mrb[0].mxu0 %v693
  %v1499 = vpop.f32.mrb[0].mxu0
  %v1500 = vadd.f32 %v1430, %v1499
  %v1501 = vpop.f32.mrb[0].mxu0
  %1502 = vdwg.mxu0
  %s1503 = scalar_lea.vmem %s4, 8
  %1504 = vst [vmem:[%s1503] sm:$0xff] %v1500
  // Predicated region
  $region14: #{forward.2} parent=0 // pred_check
    _
  $region15: #{forward.2} parent=0 // pred_check_branch
    %1506 = sbr.rel (0) target = $region17
  $region16: #{forward.2} parent=0 // pred_region
    _
  $region17: #{forward.2} parent=0 // pred_fallthru
    _
  // Predicated region
  $region18: #{forward.2} parent=0 // pred_check
    _
  $region19: #{forward.2} parent=0 // pred_check_branch
    %1508 = sbr.rel (0) target = $region21
  $region20: #{forward.2} parent=0 // pred_region
    _
  $region21: #{forward.2} parent=0 // pred_fallthru
    _
  // Predicated region
  $region22: #{forward.2} parent=0 // pred_check
    _
  $region23: #{forward.2} parent=0 // pred_check_branch
    %1510 = sbr.rel (0) target = $region25
  $region24: #{forward.2} parent=0 // pred_region
    _
  $region25: #{forward.2} parent=0 // pred_fallthru
    _
  // Predicated region
  $region26: #{forward.2} parent=0 // pred_check
    _
  $region27: #{forward.2} parent=0 // pred_check_branch
    %1512 = sbr.rel (0) target = $region29
  $region28: #{forward.2} parent=0 // pred_region
    _
  $region29: #{forward.2} parent=0 // pred_fallthru
    _

</llo_original>
